<compile_context>
chip_gen: v5e
topology: v5e:2x2
jax: 0.10.0
libtpu: 0.0.40
codegen_flags: <defaults>
</compile_context>

<pallas_src>
import functools
import math

import jax
import jax.numpy as jnp
from jax import lax
from jax.experimental import pallas as pl
from jax.experimental.pallas import tpu as pltpu

# ----------------------------- model config ---------------------------------
VOCAB = 64
SEQ = 8
D = 32          # n_embd
H = 2           # n_head
HD = D // H     # head dim
MLP = 4 * D
N_LAYERS = 2
EPS = 1e-5
NEG = -1e9


def _ln(x, g, b):
    mu = jnp.mean(x, axis=-1, keepdims=True)
    var = jnp.mean((x - mu) ** 2, axis=-1, keepdims=True)
    return (x - mu) * lax.rsqrt(var + EPS) * g + b


def _gelu_tanh(x):
    # GPT-2 "gelu_new" (tanh approximation)
    c = math.sqrt(2.0 / math.pi)
    return 0.5 * x * (1.0 + jnp.tanh(c * (x + 0.044715 * x * x * x)))


# --------------------------- fused encoder kernel ---------------------------
def encoder_kernel(ids_ref, mask_ref, wte_ref, wpe_ref,
                   ln1g_ref, ln1b_ref, wqkv_ref, bqkv_ref, wo_ref, bo_ref,
                   ln2g_ref, ln2b_ref, wfc_ref, bfc_ref, wpr_ref, bpr_ref,
                   lnfg_ref, lnfb_ref,
                   o_ref, *, batch):
    B = batch
    BS = B * SEQ

    # ---- embedding: one-hot matmul gather + positional add -----------------
    ids = ids_ref[...]                                              # (BS, 1) int32
    onehot = (ids == lax.broadcasted_iota(jnp.int32, (BS, VOCAB), 1)
              ).astype(jnp.float32)                                 # (BS, V)
    pos = jnp.broadcast_to(wpe_ref[...], (B, SEQ, D)).reshape(BS, D)
    x = jnp.dot(onehot, wte_ref[...],
                preferred_element_type=jnp.float32) + pos           # (BS, D)

    # ---- combined causal + padding bias, built ONCE, shape (B, S, S) -------
    row = lax.broadcasted_iota(jnp.int32, (SEQ, SEQ), 0)
    col = lax.broadcasted_iota(jnp.int32, (SEQ, SEQ), 1)
    causal = col <= row                                             # (S, S)
    pad = mask_ref[...] > 0.5                                       # (B, S)
    keep = jnp.logical_and(causal[None, :, :], pad[:, None, :])     # (B, S, S)
    bias = jnp.where(keep, 0.0, NEG).astype(jnp.float32)            # (B, S, S)

    # ---- transformer blocks (static unroll: N_LAYERS == 2) -----------------
    # TODO(synk): for deep stacks switch to lax.fori_loop with dynamic
    #             indexing of the stacked weight refs to bound live ranges.
    for li in range(N_LAYERS):
        # --- attention sub-layer: one fused QKV matmul (BS, D) @ (D, 3D) ----
        h1 = _ln(x, ln1g_ref[li], ln1b_ref[li])                     # (BS, D)
        qkv = jnp.dot(h1, wqkv_ref[li],
                      preferred_element_type=jnp.float32) + bqkv_ref[li]  # (BS, 3D)
        # 1/sqrt(HD) is already folded into the q columns of w_qkv at init.

        ctx_heads = []
        for h in range(H):                                          # static, H == 2
            # static lane slices + leading-dim-only (layout-preserving) reshapes
            qh = qkv[:, h * HD:(h + 1) * HD].reshape(B, SEQ, HD)
            kh = qkv[:, D + h * HD:D + (h + 1) * HD].reshape(B, SEQ, HD)
            vh = qkv[:, 2 * D + h * HD:2 * D + (h + 1) * HD].reshape(B, SEQ, HD)

            s = jnp.einsum('bqe,bke->bqk', qh, kh,
                           preferred_element_type=jnp.float32) + bias     # (B, S, S)
            m = jnp.max(s, axis=-1, keepdims=True)
            e = jnp.exp(s - m)
            p = e * pl.reciprocal(jnp.sum(e, axis=-1, keepdims=True), approx=True)
            ch = jnp.einsum('bqk,bke->bqe', p, vh,
                            preferred_element_type=jnp.float32)           # (B, S, HD)
            ctx_heads.append(ch.reshape(BS, HD))

        ctx = jnp.concatenate(ctx_heads, axis=-1)                   # (BS, D), head-major
        attn = jnp.dot(ctx, wo_ref[li],
                       preferred_element_type=jnp.float32) + bo_ref[li]   # (BS, D)
        x = x + attn

        # --- MLP sub-layer ---------------------------------------------------
        h2 = _ln(x, ln2g_ref[li], ln2b_ref[li])
        m1 = jnp.dot(h2, wfc_ref[li],
                     preferred_element_type=jnp.float32) + bfc_ref[li]    # (BS, MLP)
        m1 = _gelu_tanh(m1)
        m2 = jnp.dot(m1, wpr_ref[li],
                     preferred_element_type=jnp.float32) + bpr_ref[li]    # (BS, D)
        x = x + m2

    # ---- last-token pooling + final LayerNorm -------------------------------
    last = x.reshape(B, SEQ, D)[:, SEQ - 1, :]                      # (B, D)
    o_ref[...] = _ln(last, lnfg_ref[...], lnfb_ref[...])


# ------------------------------- parameters ----------------------------------
def init_params(key):
    std = 0.02
    scale = 1.0 / math.sqrt(HD)

    def nrm(k, shape):
        return (jax.random.normal(k, shape, jnp.float32) * std).astype(jnp.float32)

    keys = jax.random.split(key, 2 + N_LAYERS * 4)
    wte = nrm(keys[0], (VOCAB, D))
    wpe = nrm(keys[1], (SEQ, D))

    names = ["ln1_g", "ln1_b", "w_qkv", "b_qkv", "w_o", "b_o",
             "ln2_g", "ln2_b", "w_fc", "b_fc", "w_pr", "b_pr"]
    acc = {n: [] for n in names}
    for li in range(N_LAYERS):
        k0, k1, k2, k3 = keys[2 + li * 4: 2 + (li + 1) * 4]
        w_qkv = nrm(k0, (D, 3 * D))                 # GPT-2-style fused qkv proj
        # fold the attention scale 1/sqrt(HD) into the q columns (and q bias)
        w_qkv = w_qkv.at[:, :D].multiply(scale)
        b_qkv = jnp.zeros((1, 3 * D), jnp.float32)  # q-part scaling is a no-op on zeros
        acc["ln1_g"].append(jnp.ones((1, D), jnp.float32))
        acc["ln1_b"].append(jnp.zeros((1, D), jnp.float32))
        acc["w_qkv"].append(w_qkv)
        acc["b_qkv"].append(b_qkv)
        acc["w_o"].append(nrm(k1, (D, D)))
        acc["b_o"].append(jnp.zeros((1, D), jnp.float32))
        acc["ln2_g"].append(jnp.ones((1, D), jnp.float32))
        acc["ln2_b"].append(jnp.zeros((1, D), jnp.float32))
        acc["w_fc"].append(nrm(k2, (D, MLP)))
        acc["b_fc"].append(jnp.zeros((1, MLP), jnp.float32))
        acc["w_pr"].append(nrm(k3, (MLP, D)))
        acc["b_pr"].append(jnp.zeros((1, D), jnp.float32))

    params = {k: jnp.stack(v, axis=0) for k, v in acc.items()}
    params["wte"] = wte
    params["wpe"] = wpe
    params["lnf_g"] = jnp.ones((1, D), jnp.float32)
    params["lnf_b"] = jnp.zeros((1, D), jnp.float32)
    return params


# ------------------------------- full forward --------------------------------
def language_encoder_forward(params, input_ids, attention_mask):
    """input_ids: (B, S) int32; attention_mask: (B, S) float32.
    Returns sentence_embedding (B, D) == last_hidden_state[:, -1, :]."""
    B, S = input_ids.shape
    assert S == SEQ
    ids2 = input_ids.reshape(B * S, 1).astype(jnp.int32)
    mask = attention_mask.astype(jnp.float32)

    def full_spec(shape):
        nd = len(shape)
        return pl.BlockSpec(shape, lambda i, _nd=nd: (0,) * _nd)

    operands = [
        ids2, mask, params["wte"], params["wpe"],
        params["ln1_g"], params["ln1_b"],
        params["w_qkv"], params["b_qkv"], params["w_o"], params["b_o"],
        params["ln2_g"], params["ln2_b"],
        params["w_fc"], params["b_fc"], params["w_pr"], params["b_pr"],
        params["lnf_g"], params["lnf_b"],
    ]
    in_specs = [full_spec(op.shape) for op in operands]

    return pl.pallas_call(
        functools.partial(encoder_kernel, batch=B),
        grid=(1,),
        in_specs=in_specs,
        out_specs=full_spec((B, D)),
        out_shape=jax.ShapeDtypeStruct((B, D), jnp.float32),
        compiler_params=pltpu.CompilerParams(dimension_semantics=("arbitrary",)),
    )(*operands)


# ----------------------------------- main ------------------------------------
if __name__ == "__main__":
    key = jax.random.PRNGKey(0)
    kp, kid = jax.random.split(key)
    params = init_params(kp)

    B = 2
    input_ids = jax.random.randint(kid, (B, SEQ), 0, VOCAB, dtype=jnp.int32)
    attention_mask = jnp.ones((B, SEQ), jnp.float32)

    out = language_encoder_forward(params, input_ids, attention_mask)
    out = jax.block_until_ready(out)
    assert out.shape == (B, D)
    assert bool(jnp.all(jnp.isfinite(out)))
    print("KERNEL_OK")
</pallas_src>

<mosaic_0001>
module attributes {stable_mosaic.version = 11 : i64} {
  func.func @encoder_kernel(%arg0: i32, %arg1: memref<16x1xi32, #tpu.memory_space<vmem>>, %arg2: memref<2x8xf32, #tpu.memory_space<vmem>>, %arg3: memref<64x32xf32, #tpu.memory_space<vmem>>, %arg4: memref<8x32xf32, #tpu.memory_space<vmem>>, %arg5: memref<2x1x32xf32, #tpu.memory_space<vmem>>, %arg6: memref<2x1x32xf32, #tpu.memory_space<vmem>>, %arg7: memref<2x32x96xf32, #tpu.memory_space<vmem>>, %arg8: memref<2x1x96xf32, #tpu.memory_space<vmem>>, %arg9: memref<2x32x32xf32, #tpu.memory_space<vmem>>, %arg10: memref<2x1x32xf32, #tpu.memory_space<vmem>>, %arg11: memref<2x1x32xf32, #tpu.memory_space<vmem>>, %arg12: memref<2x1x32xf32, #tpu.memory_space<vmem>>, %arg13: memref<2x32x128xf32, #tpu.memory_space<vmem>>, %arg14: memref<2x1x128xf32, #tpu.memory_space<vmem>>, %arg15: memref<2x128x32xf32, #tpu.memory_space<vmem>>, %arg16: memref<2x1x32xf32, #tpu.memory_space<vmem>>, %arg17: memref<1x32xf32, #tpu.memory_space<vmem>>, %arg18: memref<1x32xf32, #tpu.memory_space<vmem>>, %arg19: memref<2x32xf32, #tpu.memory_space<vmem>>) attributes {dimension_semantics = [#tpu.dimension_semantics<arbitrary>], iteration_bounds = array<i64: 1>, scalar_prefetch = 0 : i64, scratch_operands = 0 : i64, tpu.core_type = #tpu.core_type<tc>, window_params = [{pipeline_mode = #tpu.pipeline_mode<synchronous>, transform_indices = @transform_0, window_bounds = array<i64: 16, 1>}, {pipeline_mode = #tpu.pipeline_mode<synchronous>, transform_indices = @transform_1, window_bounds = array<i64: 2, 8>}, {pipeline_mode = #tpu.pipeline_mode<synchronous>, transform_indices = @transform_2, window_bounds = array<i64: 64, 32>}, {pipeline_mode = #tpu.pipeline_mode<synchronous>, transform_indices = @transform_3, window_bounds = array<i64: 8, 32>}, {pipeline_mode = #tpu.pipeline_mode<synchronous>, transform_indices = @transform_4, window_bounds = array<i64: 2, 1, 32>}, {pipeline_mode = #tpu.pipeline_mode<synchronous>, transform_indices = @transform_5, window_bounds = array<i64: 2, 1, 32>}, {pipeline_mode = #tpu.pipeline_mode<synchronous>, transform_indices = @transform_6, window_bounds = array<i64: 2, 32, 96>}, {pipeline_mode = #tpu.pipeline_mode<synchronous>, transform_indices = @transform_7, window_bounds = array<i64: 2, 1, 96>}, {pipeline_mode = #tpu.pipeline_mode<synchronous>, transform_indices = @transform_8, window_bounds = array<i64: 2, 32, 32>}, {pipeline_mode = #tpu.pipeline_mode<synchronous>, transform_indices = @transform_9, window_bounds = array<i64: 2, 1, 32>}, {pipeline_mode = #tpu.pipeline_mode<synchronous>, transform_indices = @transform_10, window_bounds = array<i64: 2, 1, 32>}, {pipeline_mode = #tpu.pipeline_mode<synchronous>, transform_indices = @transform_11, window_bounds = array<i64: 2, 1, 32>}, {pipeline_mode = #tpu.pipeline_mode<synchronous>, transform_indices = @transform_12, window_bounds = array<i64: 2, 32, 128>}, {pipeline_mode = #tpu.pipeline_mode<synchronous>, transform_indices = @transform_13, window_bounds = array<i64: 2, 1, 128>}, {pipeline_mode = #tpu.pipeline_mode<synchronous>, transform_indices = @transform_14, window_bounds = array<i64: 2, 128, 32>}, {pipeline_mode = #tpu.pipeline_mode<synchronous>, transform_indices = @transform_15, window_bounds = array<i64: 2, 1, 32>}, {pipeline_mode = #tpu.pipeline_mode<synchronous>, transform_indices = @transform_16, window_bounds = array<i64: 1, 32>}, {pipeline_mode = #tpu.pipeline_mode<synchronous>, transform_indices = @transform_17, window_bounds = array<i64: 1, 32>}, {pipeline_mode = #tpu.pipeline_mode<synchronous>, transform_indices = @transform_18, window_bounds = array<i64: 2, 32>}]} {
    %c0 = arith.constant 0 : index
    %c0_0 = arith.constant 0 : index
    %0 = vector.load %arg1[%c0, %c0_0] : memref<16x1xi32, #tpu.memory_space<vmem>>, vector<16x1xi32>
    %1 = tpu.iota {dimensions = array<i32: 1>} : vector<16x64xi32>
    %2 = vector.broadcast %0 : vector<16x1xi32> to vector<16x64xi32>
    %3 = arith.cmpi eq, %2, %1 : vector<16x64xi32>
    %4 = arith.extui %3 : vector<16x64xi1> to vector<16x64xi32>
    %5 = arith.sitofp %4 : vector<16x64xi32> to vector<16x64xf32>
    %c0_1 = arith.constant 0 : index
    %c0_2 = arith.constant 0 : index
    %6 = vector.load %arg4[%c0_1, %c0_2] : memref<8x32xf32, #tpu.memory_space<vmem>>, vector<8x32xf32>
    %7 = vector.shape_cast %6 : vector<8x32xf32> to vector<1x8x32xf32>
    %8 = vector.broadcast %7 : vector<1x8x32xf32> to vector<2x8x32xf32>
    %9 = vector.shape_cast %8 : vector<2x8x32xf32> to vector<16x32xf32>
    %c0_3 = arith.constant 0 : index
    %c0_4 = arith.constant 0 : index
    %10 = vector.load %arg3[%c0_3, %c0_4] : memref<64x32xf32, #tpu.memory_space<vmem>>, vector<64x32xf32>
    %cst = arith.constant dense<0.000000e+00> : vector<16x32xf32>
    %11 = tpu.matmul %5, %10, %cst {dimension_numbers = #tpu.dot_dimension_numbers<[1], [0], [0], [1], [0, 0, 1, 1], [], []>} : vector<16x64xf32>, vector<64x32xf32>, vector<16x32xf32> -> vector<16x32xf32>
    %12 = arith.addf %11, %9 : vector<16x32xf32>
    %13 = tpu.iota {dimensions = array<i32: 0>} : vector<8x8xi32>
    %14 = tpu.iota {dimensions = array<i32: 1>} : vector<8x8xi32>
    %15 = arith.cmpi sle, %14, %13 : vector<8x8xi32>
    %c0_5 = arith.constant 0 : index
    %c0_6 = arith.constant 0 : index
    %16 = vector.load %arg2[%c0_5, %c0_6] : memref<2x8xf32, #tpu.memory_space<vmem>>, vector<2x8xf32>
    %cst_7 = arith.constant 5.000000e-01 : f32
    %17 = vector.broadcast %cst_7 : f32 to vector<2x8xf32>
    %18 = arith.cmpf ogt, %16, %17 : vector<2x8xf32>
    %19 = vector.shape_cast %15 : vector<8x8xi1> to vector<1x8x8xi1>
    %20 = vector.shape_cast %18 : vector<2x8xi1> to vector<2x1x8xi1>
    %21 = vector.broadcast %19 : vector<1x8x8xi1> to vector<2x8x8xi1>
    %22 = vector.broadcast %20 : vector<2x1x8xi1> to vector<2x8x8xi1>
    %23 = arith.andi %21, %22 : vector<2x8x8xi1>
    %cst_8 = arith.constant 0.000000e+00 : f32
    %cst_9 = arith.constant -1.000000e+09 : f32
    %24 = vector.broadcast %cst_8 : f32 to vector<2x8x8xf32>
    %25 = vector.broadcast %cst_9 : f32 to vector<2x8x8xf32>
    %26 = arith.select %23, %24, %25 : vector<2x8x8xi1>, vector<2x8x8xf32>
    %c0_10 = arith.constant 0 : index
    %c0_11 = arith.constant 0 : index
    %c0_12 = arith.constant 0 : index
    %27 = vector.load %arg5[%c0_10, %c0_11, %c0_12] : memref<2x1x32xf32, #tpu.memory_space<vmem>>, vector<1x1x32xf32>
    %28 = vector.shape_cast %27 : vector<1x1x32xf32> to vector<1x32xf32>
    %c0_13 = arith.constant 0 : index
    %c0_14 = arith.constant 0 : index
    %c0_15 = arith.constant 0 : index
    %29 = vector.load %arg6[%c0_13, %c0_14, %c0_15] : memref<2x1x32xf32, #tpu.memory_space<vmem>>, vector<1x1x32xf32>
    %30 = vector.shape_cast %29 : vector<1x1x32xf32> to vector<1x32xf32>
    %cst_16 = arith.constant dense<0.000000e+00> : vector<16xf32>
    %31 = vector.multi_reduction <add>, %12, %cst_16 [1] : vector<16x32xf32> to vector<16xf32>
    %32 = vector.shape_cast %31 : vector<16xf32> to vector<16x1xf32>
    %cst_17 = arith.constant 3.200000e+01 : f32
    %33 = vector.broadcast %cst_17 : f32 to vector<16x1xf32>
    %34 = arith.divf %32, %33 : vector<16x1xf32>
    %35 = vector.broadcast %34 : vector<16x1xf32> to vector<16x32xf32>
    %36 = arith.subf %12, %35 : vector<16x32xf32>
    %37 = arith.mulf %36, %36 : vector<16x32xf32>
    %cst_18 = arith.constant dense<0.000000e+00> : vector<16xf32>
    %38 = vector.multi_reduction <add>, %37, %cst_18 [1] : vector<16x32xf32> to vector<16xf32>
    %39 = vector.shape_cast %38 : vector<16xf32> to vector<16x1xf32>
    %cst_19 = arith.constant 3.200000e+01 : f32
    %40 = vector.broadcast %cst_19 : f32 to vector<16x1xf32>
    %41 = arith.divf %39, %40 : vector<16x1xf32>
    %42 = vector.broadcast %34 : vector<16x1xf32> to vector<16x32xf32>
    %43 = arith.subf %12, %42 : vector<16x32xf32>
    %cst_20 = arith.constant 9.99999974E-6 : f32
    %44 = vector.broadcast %cst_20 : f32 to vector<16x1xf32>
    %45 = arith.addf %41, %44 : vector<16x1xf32>
    %46 = math.rsqrt %45 : vector<16x1xf32>
    %47 = vector.broadcast %46 : vector<16x1xf32> to vector<16x32xf32>
    %48 = arith.mulf %43, %47 : vector<16x32xf32>
    %49 = vector.broadcast %28 : vector<1x32xf32> to vector<16x32xf32>
    %50 = arith.mulf %48, %49 : vector<16x32xf32>
    %51 = vector.broadcast %30 : vector<1x32xf32> to vector<16x32xf32>
    %52 = arith.addf %50, %51 : vector<16x32xf32>
    %c0_21 = arith.constant 0 : index
    %c0_22 = arith.constant 0 : index
    %c0_23 = arith.constant 0 : index
    %53 = vector.load %arg7[%c0_21, %c0_22, %c0_23] : memref<2x32x96xf32, #tpu.memory_space<vmem>>, vector<1x32x96xf32>
    %54 = vector.shape_cast %53 : vector<1x32x96xf32> to vector<32x96xf32>
    %cst_24 = arith.constant dense<0.000000e+00> : vector<16x96xf32>
    %55 = tpu.matmul %52, %54, %cst_24 {dimension_numbers = #tpu.dot_dimension_numbers<[1], [0], [0], [1], [0, 0, 1, 1], [], []>} : vector<16x32xf32>, vector<32x96xf32>, vector<16x96xf32> -> vector<16x96xf32>
    %c0_25 = arith.constant 0 : index
    %c0_26 = arith.constant 0 : index
    %c0_27 = arith.constant 0 : index
    %56 = vector.load %arg8[%c0_25, %c0_26, %c0_27] : memref<2x1x96xf32, #tpu.memory_space<vmem>>, vector<1x1x96xf32>
    %57 = vector.shape_cast %56 : vector<1x1x96xf32> to vector<1x96xf32>
    %58 = vector.broadcast %57 : vector<1x96xf32> to vector<16x96xf32>
    %59 = arith.addf %55, %58 : vector<16x96xf32>
    %60 = vector.extract_strided_slice %59 {offsets = [0, 0], sizes = [16, 16], strides = [1, 1]} : vector<16x96xf32> to vector<16x16xf32>
    %61 = vector.shape_cast %60 : vector<16x16xf32> to vector<2x8x16xf32>
    %62 = vector.extract_strided_slice %59 {offsets = [0, 32], sizes = [16, 16], strides = [1, 1]} : vector<16x96xf32> to vector<16x16xf32>
    %63 = vector.shape_cast %62 : vector<16x16xf32> to vector<2x8x16xf32>
    %64 = vector.extract_strided_slice %59 {offsets = [0, 64], sizes = [16, 16], strides = [1, 1]} : vector<16x96xf32> to vector<16x16xf32>
    %65 = vector.shape_cast %64 : vector<16x16xf32> to vector<2x8x16xf32>
    "tpu.trace_start"() <{level = 10 : i32, message = "bqe,bke->bqk"}> : () -> ()
    %cst_28 = arith.constant dense<0.000000e+00> : vector<2x8x8xf32>
    %66 = tpu.matmul %61, %63, %cst_28 {dimension_numbers = #tpu.dot_dimension_numbers<[2], [2], [1], [1], [0, 0, 0, 1, 1, 1], [0], [0]>} : vector<2x8x16xf32>, vector<2x8x16xf32>, vector<2x8x8xf32> -> vector<2x8x8xf32>
    "tpu.trace_stop"() : () -> ()
    %67 = arith.addf %66, %26 : vector<2x8x8xf32>
    %cst_29 = arith.constant dense<0xFF800000> : vector<2x8xf32>
    %68 = vector.multi_reduction <maximumf>, %67, %cst_29 [2] : vector<2x8x8xf32> to vector<2x8xf32>
    %69 = vector.shape_cast %68 : vector<2x8xf32> to vector<2x8x1xf32>
    %70 = vector.broadcast %69 : vector<2x8x1xf32> to vector<2x8x8xf32>
    %71 = arith.subf %67, %70 : vector<2x8x8xf32>
    %72 = math.exp %71 : vector<2x8x8xf32>
    %cst_30 = arith.constant dense<0.000000e+00> : vector<2x8xf32>
    %73 = vector.multi_reduction <add>, %72, %cst_30 [2] : vector<2x8x8xf32> to vector<2x8xf32>
    %74 = vector.shape_cast %73 : vector<2x8xf32> to vector<2x8x1xf32>
    %75 = tpu.reciprocal %74 {approx = true} : vector<2x8x1xf32> -> vector<2x8x1xf32>
    %76 = vector.broadcast %75 : vector<2x8x1xf32> to vector<2x8x8xf32>
    %77 = arith.mulf %72, %76 : vector<2x8x8xf32>
    "tpu.trace_start"() <{level = 10 : i32, message = "bqk,bke->bqe"}> : () -> ()
    %cst_31 = arith.constant dense<0.000000e+00> : vector<2x8x16xf32>
    %78 = tpu.matmul %77, %65, %cst_31 {dimension_numbers = #tpu.dot_dimension_numbers<[2], [1], [1], [2], [0, 0, 0, 1, 1, 2], [0], [0]>} : vector<2x8x8xf32>, vector<2x8x16xf32>, vector<2x8x16xf32> -> vector<2x8x16xf32>
    "tpu.trace_stop"() : () -> ()
    %79 = vector.shape_cast %78 : vector<2x8x16xf32> to vector<16x16xf32>
    %80 = vector.extract_strided_slice %59 {offsets = [0, 16], sizes = [16, 16], strides = [1, 1]} : vector<16x96xf32> to vector<16x16xf32>
    %81 = vector.shape_cast %80 : vector<16x16xf32> to vector<2x8x16xf32>
    %82 = vector.extract_strided_slice %59 {offsets = [0, 48], sizes = [16, 16], strides = [1, 1]} : vector<16x96xf32> to vector<16x16xf32>
    %83 = vector.shape_cast %82 : vector<16x16xf32> to vector<2x8x16xf32>
    %84 = vector.extract_strided_slice %59 {offsets = [0, 80], sizes = [16, 16], strides = [1, 1]} : vector<16x96xf32> to vector<16x16xf32>
    %85 = vector.shape_cast %84 : vector<16x16xf32> to vector<2x8x16xf32>
    "tpu.trace_start"() <{level = 10 : i32, message = "bqe,bke->bqk"}> : () -> ()
    %cst_32 = arith.constant dense<0.000000e+00> : vector<2x8x8xf32>
    %86 = tpu.matmul %81, %83, %cst_32 {dimension_numbers = #tpu.dot_dimension_numbers<[2], [2], [1], [1], [0, 0, 0, 1, 1, 1], [0], [0]>} : vector<2x8x16xf32>, vector<2x8x16xf32>, vector<2x8x8xf32> -> vector<2x8x8xf32>
    "tpu.trace_stop"() : () -> ()
    %87 = arith.addf %86, %26 : vector<2x8x8xf32>
    %cst_33 = arith.constant dense<0xFF800000> : vector<2x8xf32>
    %88 = vector.multi_reduction <maximumf>, %87, %cst_33 [2] : vector<2x8x8xf32> to vector<2x8xf32>
    %89 = vector.shape_cast %88 : vector<2x8xf32> to vector<2x8x1xf32>
    %90 = vector.broadcast %89 : vector<2x8x1xf32> to vector<2x8x8xf32>
    %91 = arith.subf %87, %90 : vector<2x8x8xf32>
    %92 = math.exp %91 : vector<2x8x8xf32>
    %cst_34 = arith.constant dense<0.000000e+00> : vector<2x8xf32>
    %93 = vector.multi_reduction <add>, %92, %cst_34 [2] : vector<2x8x8xf32> to vector<2x8xf32>
    %94 = vector.shape_cast %93 : vector<2x8xf32> to vector<2x8x1xf32>
    %95 = tpu.reciprocal %94 {approx = true} : vector<2x8x1xf32> -> vector<2x8x1xf32>
    %96 = vector.broadcast %95 : vector<2x8x1xf32> to vector<2x8x8xf32>
    %97 = arith.mulf %92, %96 : vector<2x8x8xf32>
    "tpu.trace_start"() <{level = 10 : i32, message = "bqk,bke->bqe"}> : () -> ()
    %cst_35 = arith.constant dense<0.000000e+00> : vector<2x8x16xf32>
    %98 = tpu.matmul %97, %85, %cst_35 {dimension_numbers = #tpu.dot_dimension_numbers<[2], [1], [1], [2], [0, 0, 0, 1, 1, 2], [0], [0]>} : vector<2x8x8xf32>, vector<2x8x16xf32>, vector<2x8x16xf32> -> vector<2x8x16xf32>
    "tpu.trace_stop"() : () -> ()
    %99 = vector.shape_cast %98 : vector<2x8x16xf32> to vector<16x16xf32>
    %100 = tpu.concatenate %79, %99 in 1 : vector<16x16xf32>, vector<16x16xf32> -> vector<16x32xf32>
    %c0_36 = arith.constant 0 : index
    %c0_37 = arith.constant 0 : index
    %c0_38 = arith.constant 0 : index
    %101 = vector.load %arg9[%c0_36, %c0_37, %c0_38] : memref<2x32x32xf32, #tpu.memory_space<vmem>>, vector<1x32x32xf32>
    %102 = vector.shape_cast %101 : vector<1x32x32xf32> to vector<32x32xf32>
    %cst_39 = arith.constant dense<0.000000e+00> : vector<16x32xf32>
    %103 = tpu.matmul %100, %102, %cst_39 {dimension_numbers = #tpu.dot_dimension_numbers<[1], [0], [0], [1], [0, 0, 1, 1], [], []>} : vector<16x32xf32>, vector<32x32xf32>, vector<16x32xf32> -> vector<16x32xf32>
    %c0_40 = arith.constant 0 : index
    %c0_41 = arith.constant 0 : index
    %c0_42 = arith.constant 0 : index
    %104 = vector.load %arg10[%c0_40, %c0_41, %c0_42] : memref<2x1x32xf32, #tpu.memory_space<vmem>>, vector<1x1x32xf32>
    %105 = vector.shape_cast %104 : vector<1x1x32xf32> to vector<1x32xf32>
    %106 = vector.broadcast %105 : vector<1x32xf32> to vector<16x32xf32>
    %107 = arith.addf %103, %106 : vector<16x32xf32>
    %108 = arith.addf %12, %107 : vector<16x32xf32>
    %c0_43 = arith.constant 0 : index
    %c0_44 = arith.constant 0 : index
    %c0_45 = arith.constant 0 : index
    %109 = vector.load %arg11[%c0_43, %c0_44, %c0_45] : memref<2x1x32xf32, #tpu.memory_space<vmem>>, vector<1x1x32xf32>
    %110 = vector.shape_cast %109 : vector<1x1x32xf32> to vector<1x32xf32>
    %c0_46 = arith.constant 0 : index
    %c0_47 = arith.constant 0 : index
    %c0_48 = arith.constant 0 : index
    %111 = vector.load %arg12[%c0_46, %c0_47, %c0_48] : memref<2x1x32xf32, #tpu.memory_space<vmem>>, vector<1x1x32xf32>
    %112 = vector.shape_cast %111 : vector<1x1x32xf32> to vector<1x32xf32>
    %cst_49 = arith.constant dense<0.000000e+00> : vector<16xf32>
    %113 = vector.multi_reduction <add>, %108, %cst_49 [1] : vector<16x32xf32> to vector<16xf32>
    %114 = vector.shape_cast %113 : vector<16xf32> to vector<16x1xf32>
    %cst_50 = arith.constant 3.200000e+01 : f32
    %115 = vector.broadcast %cst_50 : f32 to vector<16x1xf32>
    %116 = arith.divf %114, %115 : vector<16x1xf32>
    %117 = vector.broadcast %116 : vector<16x1xf32> to vector<16x32xf32>
    %118 = arith.subf %108, %117 : vector<16x32xf32>
    %119 = arith.mulf %118, %118 : vector<16x32xf32>
    %cst_51 = arith.constant dense<0.000000e+00> : vector<16xf32>
    %120 = vector.multi_reduction <add>, %119, %cst_51 [1] : vector<16x32xf32> to vector<16xf32>
    %121 = vector.shape_cast %120 : vector<16xf32> to vector<16x1xf32>
    %cst_52 = arith.constant 3.200000e+01 : f32
    %122 = vector.broadcast %cst_52 : f32 to vector<16x1xf32>
    %123 = arith.divf %121, %122 : vector<16x1xf32>
    %124 = vector.broadcast %116 : vector<16x1xf32> to vector<16x32xf32>
    %125 = arith.subf %108, %124 : vector<16x32xf32>
    %cst_53 = arith.constant 9.99999974E-6 : f32
    %126 = vector.broadcast %cst_53 : f32 to vector<16x1xf32>
    %127 = arith.addf %123, %126 : vector<16x1xf32>
    %128 = math.rsqrt %127 : vector<16x1xf32>
    %129 = vector.broadcast %128 : vector<16x1xf32> to vector<16x32xf32>
    %130 = arith.mulf %125, %129 : vector<16x32xf32>
    %131 = vector.broadcast %110 : vector<1x32xf32> to vector<16x32xf32>
    %132 = arith.mulf %130, %131 : vector<16x32xf32>
    %133 = vector.broadcast %112 : vector<1x32xf32> to vector<16x32xf32>
    %134 = arith.addf %132, %133 : vector<16x32xf32>
    %c0_54 = arith.constant 0 : index
    %c0_55 = arith.constant 0 : index
    %c0_56 = arith.constant 0 : index
    %135 = vector.load %arg13[%c0_54, %c0_55, %c0_56] : memref<2x32x128xf32, #tpu.memory_space<vmem>>, vector<1x32x128xf32>
    %136 = vector.shape_cast %135 : vector<1x32x128xf32> to vector<32x128xf32>
    %cst_57 = arith.constant dense<0.000000e+00> : vector<16x128xf32>
    %137 = tpu.matmul %134, %136, %cst_57 {dimension_numbers = #tpu.dot_dimension_numbers<[1], [0], [0], [1], [0, 0, 1, 1], [], []>} : vector<16x32xf32>, vector<32x128xf32>, vector<16x128xf32> -> vector<16x128xf32>
    %c0_58 = arith.constant 0 : index
    %c0_59 = arith.constant 0 : index
    %c0_60 = arith.constant 0 : index
    %138 = vector.load %arg14[%c0_58, %c0_59, %c0_60] : memref<2x1x128xf32, #tpu.memory_space<vmem>>, vector<1x1x128xf32>
    %139 = vector.shape_cast %138 : vector<1x1x128xf32> to vector<1x128xf32>
    %140 = vector.broadcast %139 : vector<1x128xf32> to vector<16x128xf32>
    %141 = arith.addf %137, %140 : vector<16x128xf32>
    %cst_61 = arith.constant 5.000000e-01 : f32
    %142 = vector.broadcast %cst_61 : f32 to vector<16x128xf32>
    %143 = arith.mulf %142, %141 : vector<16x128xf32>
    %cst_62 = arith.constant 4.471500e-02 : f32
    %144 = vector.broadcast %cst_62 : f32 to vector<16x128xf32>
    %145 = arith.mulf %144, %141 : vector<16x128xf32>
    %146 = arith.mulf %145, %141 : vector<16x128xf32>
    %147 = arith.mulf %146, %141 : vector<16x128xf32>
    %148 = arith.addf %141, %147 : vector<16x128xf32>
    %cst_63 = arith.constant 0.797884583 : f32
    %149 = vector.broadcast %cst_63 : f32 to vector<16x128xf32>
    %150 = arith.mulf %149, %148 : vector<16x128xf32>
    %151 = math.tanh %150 : vector<16x128xf32>
    %cst_64 = arith.constant 1.000000e+00 : f32
    %152 = vector.broadcast %cst_64 : f32 to vector<16x128xf32>
    %153 = arith.addf %152, %151 : vector<16x128xf32>
    %154 = arith.mulf %143, %153 : vector<16x128xf32>
    %c0_65 = arith.constant 0 : index
    %c0_66 = arith.constant 0 : index
    %c0_67 = arith.constant 0 : index
    %155 = vector.load %arg15[%c0_65, %c0_66, %c0_67] : memref<2x128x32xf32, #tpu.memory_space<vmem>>, vector<1x128x32xf32>
    %156 = vector.shape_cast %155 : vector<1x128x32xf32> to vector<128x32xf32>
    %cst_68 = arith.constant dense<0.000000e+00> : vector<16x32xf32>
    %157 = tpu.matmul %154, %156, %cst_68 {dimension_numbers = #tpu.dot_dimension_numbers<[1], [0], [0], [1], [0, 0, 1, 1], [], []>} : vector<16x128xf32>, vector<128x32xf32>, vector<16x32xf32> -> vector<16x32xf32>
    %c0_69 = arith.constant 0 : index
    %c0_70 = arith.constant 0 : index
    %c0_71 = arith.constant 0 : index
    %158 = vector.load %arg16[%c0_69, %c0_70, %c0_71] : memref<2x1x32xf32, #tpu.memory_space<vmem>>, vector<1x1x32xf32>
    %159 = vector.shape_cast %158 : vector<1x1x32xf32> to vector<1x32xf32>
    %160 = vector.broadcast %159 : vector<1x32xf32> to vector<16x32xf32>
    %161 = arith.addf %157, %160 : vector<16x32xf32>
    %162 = arith.addf %108, %161 : vector<16x32xf32>
    %c1 = arith.constant 1 : index
    %c0_72 = arith.constant 0 : index
    %c0_73 = arith.constant 0 : index
    %163 = vector.load %arg5[%c1, %c0_72, %c0_73] : memref<2x1x32xf32, #tpu.memory_space<vmem>>, vector<1x1x32xf32>
    %164 = vector.shape_cast %163 : vector<1x1x32xf32> to vector<1x32xf32>
    %c1_74 = arith.constant 1 : index
    %c0_75 = arith.constant 0 : index
    %c0_76 = arith.constant 0 : index
    %165 = vector.load %arg6[%c1_74, %c0_75, %c0_76] : memref<2x1x32xf32, #tpu.memory_space<vmem>>, vector<1x1x32xf32>
    %166 = vector.shape_cast %165 : vector<1x1x32xf32> to vector<1x32xf32>
    %cst_77 = arith.constant dense<0.000000e+00> : vector<16xf32>
    %167 = vector.multi_reduction <add>, %162, %cst_77 [1] : vector<16x32xf32> to vector<16xf32>
    %168 = vector.shape_cast %167 : vector<16xf32> to vector<16x1xf32>
    %cst_78 = arith.constant 3.200000e+01 : f32
    %169 = vector.broadcast %cst_78 : f32 to vector<16x1xf32>
    %170 = arith.divf %168, %169 : vector<16x1xf32>
    %171 = vector.broadcast %170 : vector<16x1xf32> to vector<16x32xf32>
    %172 = arith.subf %162, %171 : vector<16x32xf32>
    %173 = arith.mulf %172, %172 : vector<16x32xf32>
    %cst_79 = arith.constant dense<0.000000e+00> : vector<16xf32>
    %174 = vector.multi_reduction <add>, %173, %cst_79 [1] : vector<16x32xf32> to vector<16xf32>
    %175 = vector.shape_cast %174 : vector<16xf32> to vector<16x1xf32>
    %cst_80 = arith.constant 3.200000e+01 : f32
    %176 = vector.broadcast %cst_80 : f32 to vector<16x1xf32>
    %177 = arith.divf %175, %176 : vector<16x1xf32>
    %178 = vector.broadcast %170 : vector<16x1xf32> to vector<16x32xf32>
    %179 = arith.subf %162, %178 : vector<16x32xf32>
    %cst_81 = arith.constant 9.99999974E-6 : f32
    %180 = vector.broadcast %cst_81 : f32 to vector<16x1xf32>
    %181 = arith.addf %177, %180 : vector<16x1xf32>
    %182 = math.rsqrt %181 : vector<16x1xf32>
    %183 = vector.broadcast %182 : vector<16x1xf32> to vector<16x32xf32>
    %184 = arith.mulf %179, %183 : vector<16x32xf32>
    %185 = vector.broadcast %164 : vector<1x32xf32> to vector<16x32xf32>
    %186 = arith.mulf %184, %185 : vector<16x32xf32>
    %187 = vector.broadcast %166 : vector<1x32xf32> to vector<16x32xf32>
    %188 = arith.addf %186, %187 : vector<16x32xf32>
    %c1_82 = arith.constant 1 : index
    %c0_83 = arith.constant 0 : index
    %c0_84 = arith.constant 0 : index
    %189 = vector.load %arg7[%c1_82, %c0_83, %c0_84] : memref<2x32x96xf32, #tpu.memory_space<vmem>>, vector<1x32x96xf32>
    %190 = vector.shape_cast %189 : vector<1x32x96xf32> to vector<32x96xf32>
    %cst_85 = arith.constant dense<0.000000e+00> : vector<16x96xf32>
    %191 = tpu.matmul %188, %190, %cst_85 {dimension_numbers = #tpu.dot_dimension_numbers<[1], [0], [0], [1], [0, 0, 1, 1], [], []>} : vector<16x32xf32>, vector<32x96xf32>, vector<16x96xf32> -> vector<16x96xf32>
    %c1_86 = arith.constant 1 : index
    %c0_87 = arith.constant 0 : index
    %c0_88 = arith.constant 0 : index
    %192 = vector.load %arg8[%c1_86, %c0_87, %c0_88] : memref<2x1x96xf32, #tpu.memory_space<vmem>>, vector<1x1x96xf32>
    %193 = vector.shape_cast %192 : vector<1x1x96xf32> to vector<1x96xf32>
    %194 = vector.broadcast %193 : vector<1x96xf32> to vector<16x96xf32>
    %195 = arith.addf %191, %194 : vector<16x96xf32>
    %196 = vector.extract_strided_slice %195 {offsets = [0, 0], sizes = [16, 16], strides = [1, 1]} : vector<16x96xf32> to vector<16x16xf32>
    %197 = vector.shape_cast %196 : vector<16x16xf32> to vector<2x8x16xf32>
    %198 = vector.extract_strided_slice %195 {offsets = [0, 32], sizes = [16, 16], strides = [1, 1]} : vector<16x96xf32> to vector<16x16xf32>
    %199 = vector.shape_cast %198 : vector<16x16xf32> to vector<2x8x16xf32>
    %200 = vector.extract_strided_slice %195 {offsets = [0, 64], sizes = [16, 16], strides = [1, 1]} : vector<16x96xf32> to vector<16x16xf32>
    %201 = vector.shape_cast %200 : vector<16x16xf32> to vector<2x8x16xf32>
    "tpu.trace_start"() <{level = 10 : i32, message = "bqe,bke->bqk"}> : () -> ()
    %cst_89 = arith.constant dense<0.000000e+00> : vector<2x8x8xf32>
    %202 = tpu.matmul %197, %199, %cst_89 {dimension_numbers = #tpu.dot_dimension_numbers<[2], [2], [1], [1], [0, 0, 0, 1, 1, 1], [0], [0]>} : vector<2x8x16xf32>, vector<2x8x16xf32>, vector<2x8x8xf32> -> vector<2x8x8xf32>
    "tpu.trace_stop"() : () -> ()
    %203 = arith.addf %202, %26 : vector<2x8x8xf32>
    %cst_90 = arith.constant dense<0xFF800000> : vector<2x8xf32>
    %204 = vector.multi_reduction <maximumf>, %203, %cst_90 [2] : vector<2x8x8xf32> to vector<2x8xf32>
    %205 = vector.shape_cast %204 : vector<2x8xf32> to vector<2x8x1xf32>
    %206 = vector.broadcast %205 : vector<2x8x1xf32> to vector<2x8x8xf32>
    %207 = arith.subf %203, %206 : vector<2x8x8xf32>
    %208 = math.exp %207 : vector<2x8x8xf32>
    %cst_91 = arith.constant dense<0.000000e+00> : vector<2x8xf32>
    %209 = vector.multi_reduction <add>, %208, %cst_91 [2] : vector<2x8x8xf32> to vector<2x8xf32>
    %210 = vector.shape_cast %209 : vector<2x8xf32> to vector<2x8x1xf32>
    %211 = tpu.reciprocal %210 {approx = true} : vector<2x8x1xf32> -> vector<2x8x1xf32>
    %212 = vector.broadcast %211 : vector<2x8x1xf32> to vector<2x8x8xf32>
    %213 = arith.mulf %208, %212 : vector<2x8x8xf32>
    "tpu.trace_start"() <{level = 10 : i32, message = "bqk,bke->bqe"}> : () -> ()
    %cst_92 = arith.constant dense<0.000000e+00> : vector<2x8x16xf32>
    %214 = tpu.matmul %213, %201, %cst_92 {dimension_numbers = #tpu.dot_dimension_numbers<[2], [1], [1], [2], [0, 0, 0, 1, 1, 2], [0], [0]>} : vector<2x8x8xf32>, vector<2x8x16xf32>, vector<2x8x16xf32> -> vector<2x8x16xf32>
    "tpu.trace_stop"() : () -> ()
    %215 = vector.shape_cast %214 : vector<2x8x16xf32> to vector<16x16xf32>
    %216 = vector.extract_strided_slice %195 {offsets = [0, 16], sizes = [16, 16], strides = [1, 1]} : vector<16x96xf32> to vector<16x16xf32>
    %217 = vector.shape_cast %216 : vector<16x16xf32> to vector<2x8x16xf32>
    %218 = vector.extract_strided_slice %195 {offsets = [0, 48], sizes = [16, 16], strides = [1, 1]} : vector<16x96xf32> to vector<16x16xf32>
    %219 = vector.shape_cast %218 : vector<16x16xf32> to vector<2x8x16xf32>
    %220 = vector.extract_strided_slice %195 {offsets = [0, 80], sizes = [16, 16], strides = [1, 1]} : vector<16x96xf32> to vector<16x16xf32>
    %221 = vector.shape_cast %220 : vector<16x16xf32> to vector<2x8x16xf32>
    "tpu.trace_start"() <{level = 10 : i32, message = "bqe,bke->bqk"}> : () -> ()
    %cst_93 = arith.constant dense<0.000000e+00> : vector<2x8x8xf32>
    %222 = tpu.matmul %217, %219, %cst_93 {dimension_numbers = #tpu.dot_dimension_numbers<[2], [2], [1], [1], [0, 0, 0, 1, 1, 1], [0], [0]>} : vector<2x8x16xf32>, vector<2x8x16xf32>, vector<2x8x8xf32> -> vector<2x8x8xf32>
    "tpu.trace_stop"() : () -> ()
    %223 = arith.addf %222, %26 : vector<2x8x8xf32>
    %cst_94 = arith.constant dense<0xFF800000> : vector<2x8xf32>
    %224 = vector.multi_reduction <maximumf>, %223, %cst_94 [2] : vector<2x8x8xf32> to vector<2x8xf32>
    %225 = vector.shape_cast %224 : vector<2x8xf32> to vector<2x8x1xf32>
    %226 = vector.broadcast %225 : vector<2x8x1xf32> to vector<2x8x8xf32>
    %227 = arith.subf %223, %226 : vector<2x8x8xf32>
    %228 = math.exp %227 : vector<2x8x8xf32>
    %cst_95 = arith.constant dense<0.000000e+00> : vector<2x8xf32>
    %229 = vector.multi_reduction <add>, %228, %cst_95 [2] : vector<2x8x8xf32> to vector<2x8xf32>
    %230 = vector.shape_cast %229 : vector<2x8xf32> to vector<2x8x1xf32>
    %231 = tpu.reciprocal %230 {approx = true} : vector<2x8x1xf32> -> vector<2x8x1xf32>
    %232 = vector.broadcast %231 : vector<2x8x1xf32> to vector<2x8x8xf32>
    %233 = arith.mulf %228, %232 : vector<2x8x8xf32>
    "tpu.trace_start"() <{level = 10 : i32, message = "bqk,bke->bqe"}> : () -> ()
    %cst_96 = arith.constant dense<0.000000e+00> : vector<2x8x16xf32>
    %234 = tpu.matmul %233, %221, %cst_96 {dimension_numbers = #tpu.dot_dimension_numbers<[2], [1], [1], [2], [0, 0, 0, 1, 1, 2], [0], [0]>} : vector<2x8x8xf32>, vector<2x8x16xf32>, vector<2x8x16xf32> -> vector<2x8x16xf32>
    "tpu.trace_stop"() : () -> ()
    %235 = vector.shape_cast %234 : vector<2x8x16xf32> to vector<16x16xf32>
    %236 = tpu.concatenate %215, %235 in 1 : vector<16x16xf32>, vector<16x16xf32> -> vector<16x32xf32>
    %c1_97 = arith.constant 1 : index
    %c0_98 = arith.constant 0 : index
    %c0_99 = arith.constant 0 : index
    %237 = vector.load %arg9[%c1_97, %c0_98, %c0_99] : memref<2x32x32xf32, #tpu.memory_space<vmem>>, vector<1x32x32xf32>
    %238 = vector.shape_cast %237 : vector<1x32x32xf32> to vector<32x32xf32>
    %cst_100 = arith.constant dense<0.000000e+00> : vector<16x32xf32>
    %239 = tpu.matmul %236, %238, %cst_100 {dimension_numbers = #tpu.dot_dimension_numbers<[1], [0], [0], [1], [0, 0, 1, 1], [], []>} : vector<16x32xf32>, vector<32x32xf32>, vector<16x32xf32> -> vector<16x32xf32>
    %c1_101 = arith.constant 1 : index
    %c0_102 = arith.constant 0 : index
    %c0_103 = arith.constant 0 : index
    %240 = vector.load %arg10[%c1_101, %c0_102, %c0_103] : memref<2x1x32xf32, #tpu.memory_space<vmem>>, vector<1x1x32xf32>
    %241 = vector.shape_cast %240 : vector<1x1x32xf32> to vector<1x32xf32>
    %242 = vector.broadcast %241 : vector<1x32xf32> to vector<16x32xf32>
    %243 = arith.addf %239, %242 : vector<16x32xf32>
    %244 = arith.addf %162, %243 : vector<16x32xf32>
    %c1_104 = arith.constant 1 : index
    %c0_105 = arith.constant 0 : index
    %c0_106 = arith.constant 0 : index
    %245 = vector.load %arg11[%c1_104, %c0_105, %c0_106] : memref<2x1x32xf32, #tpu.memory_space<vmem>>, vector<1x1x32xf32>
    %246 = vector.shape_cast %245 : vector<1x1x32xf32> to vector<1x32xf32>
    %c1_107 = arith.constant 1 : index
    %c0_108 = arith.constant 0 : index
    %c0_109 = arith.constant 0 : index
    %247 = vector.load %arg12[%c1_107, %c0_108, %c0_109] : memref<2x1x32xf32, #tpu.memory_space<vmem>>, vector<1x1x32xf32>
    %248 = vector.shape_cast %247 : vector<1x1x32xf32> to vector<1x32xf32>
    %cst_110 = arith.constant dense<0.000000e+00> : vector<16xf32>
    %249 = vector.multi_reduction <add>, %244, %cst_110 [1] : vector<16x32xf32> to vector<16xf32>
    %250 = vector.shape_cast %249 : vector<16xf32> to vector<16x1xf32>
    %cst_111 = arith.constant 3.200000e+01 : f32
    %251 = vector.broadcast %cst_111 : f32 to vector<16x1xf32>
    %252 = arith.divf %250, %251 : vector<16x1xf32>
    %253 = vector.broadcast %252 : vector<16x1xf32> to vector<16x32xf32>
    %254 = arith.subf %244, %253 : vector<16x32xf32>
    %255 = arith.mulf %254, %254 : vector<16x32xf32>
    %cst_112 = arith.constant dense<0.000000e+00> : vector<16xf32>
    %256 = vector.multi_reduction <add>, %255, %cst_112 [1] : vector<16x32xf32> to vector<16xf32>
    %257 = vector.shape_cast %256 : vector<16xf32> to vector<16x1xf32>
    %cst_113 = arith.constant 3.200000e+01 : f32
    %258 = vector.broadcast %cst_113 : f32 to vector<16x1xf32>
    %259 = arith.divf %257, %258 : vector<16x1xf32>
    %260 = vector.broadcast %252 : vector<16x1xf32> to vector<16x32xf32>
    %261 = arith.subf %244, %260 : vector<16x32xf32>
    %cst_114 = arith.constant 9.99999974E-6 : f32
    %262 = vector.broadcast %cst_114 : f32 to vector<16x1xf32>
    %263 = arith.addf %259, %262 : vector<16x1xf32>
    %264 = math.rsqrt %263 : vector<16x1xf32>
    %265 = vector.broadcast %264 : vector<16x1xf32> to vector<16x32xf32>
    %266 = arith.mulf %261, %265 : vector<16x32xf32>
    %267 = vector.broadcast %246 : vector<1x32xf32> to vector<16x32xf32>
    %268 = arith.mulf %266, %267 : vector<16x32xf32>
    %269 = vector.broadcast %248 : vector<1x32xf32> to vector<16x32xf32>
    %270 = arith.addf %268, %269 : vector<16x32xf32>
    %c1_115 = arith.constant 1 : index
    %c0_116 = arith.constant 0 : index
    %c0_117 = arith.constant 0 : index
    %271 = vector.load %arg13[%c1_115, %c0_116, %c0_117] : memref<2x32x128xf32, #tpu.memory_space<vmem>>, vector<1x32x128xf32>
    %272 = vector.shape_cast %271 : vector<1x32x128xf32> to vector<32x128xf32>
    %cst_118 = arith.constant dense<0.000000e+00> : vector<16x128xf32>
    %273 = tpu.matmul %270, %272, %cst_118 {dimension_numbers = #tpu.dot_dimension_numbers<[1], [0], [0], [1], [0, 0, 1, 1], [], []>} : vector<16x32xf32>, vector<32x128xf32>, vector<16x128xf32> -> vector<16x128xf32>
    %c1_119 = arith.constant 1 : index
    %c0_120 = arith.constant 0 : index
    %c0_121 = arith.constant 0 : index
    %274 = vector.load %arg14[%c1_119, %c0_120, %c0_121] : memref<2x1x128xf32, #tpu.memory_space<vmem>>, vector<1x1x128xf32>
    %275 = vector.shape_cast %274 : vector<1x1x128xf32> to vector<1x128xf32>
    %276 = vector.broadcast %275 : vector<1x128xf32> to vector<16x128xf32>
    %277 = arith.addf %273, %276 : vector<16x128xf32>
    %cst_122 = arith.constant 5.000000e-01 : f32
    %278 = vector.broadcast %cst_122 : f32 to vector<16x128xf32>
    %279 = arith.mulf %278, %277 : vector<16x128xf32>
    %cst_123 = arith.constant 4.471500e-02 : f32
    %280 = vector.broadcast %cst_123 : f32 to vector<16x128xf32>
    %281 = arith.mulf %280, %277 : vector<16x128xf32>
    %282 = arith.mulf %281, %277 : vector<16x128xf32>
    %283 = arith.mulf %282, %277 : vector<16x128xf32>
    %284 = arith.addf %277, %283 : vector<16x128xf32>
    %cst_124 = arith.constant 0.797884583 : f32
    %285 = vector.broadcast %cst_124 : f32 to vector<16x128xf32>
    %286 = arith.mulf %285, %284 : vector<16x128xf32>
    %287 = math.tanh %286 : vector<16x128xf32>
    %cst_125 = arith.constant 1.000000e+00 : f32
    %288 = vector.broadcast %cst_125 : f32 to vector<16x128xf32>
    %289 = arith.addf %288, %287 : vector<16x128xf32>
    %290 = arith.mulf %279, %289 : vector<16x128xf32>
    %c1_126 = arith.constant 1 : index
    %c0_127 = arith.constant 0 : index
    %c0_128 = arith.constant 0 : index
    %291 = vector.load %arg15[%c1_126, %c0_127, %c0_128] : memref<2x128x32xf32, #tpu.memory_space<vmem>>, vector<1x128x32xf32>
    %292 = vector.shape_cast %291 : vector<1x128x32xf32> to vector<128x32xf32>
    %cst_129 = arith.constant dense<0.000000e+00> : vector<16x32xf32>
    %293 = tpu.matmul %290, %292, %cst_129 {dimension_numbers = #tpu.dot_dimension_numbers<[1], [0], [0], [1], [0, 0, 1, 1], [], []>} : vector<16x128xf32>, vector<128x32xf32>, vector<16x32xf32> -> vector<16x32xf32>
    %c1_130 = arith.constant 1 : index
    %c0_131 = arith.constant 0 : index
    %c0_132 = arith.constant 0 : index
    %294 = vector.load %arg16[%c1_130, %c0_131, %c0_132] : memref<2x1x32xf32, #tpu.memory_space<vmem>>, vector<1x1x32xf32>
    %295 = vector.shape_cast %294 : vector<1x1x32xf32> to vector<1x32xf32>
    %296 = vector.broadcast %295 : vector<1x32xf32> to vector<16x32xf32>
    %297 = arith.addf %293, %296 : vector<16x32xf32>
    %298 = arith.addf %244, %297 : vector<16x32xf32>
    %299 = vector.shape_cast %298 : vector<16x32xf32> to vector<2x8x32xf32>
    %300 = vector.extract_strided_slice %299 {offsets = [0, 7, 0], sizes = [2, 1, 32], strides = [1, 1, 1]} : vector<2x8x32xf32> to vector<2x1x32xf32>
    %301 = vector.shape_cast %300 : vector<2x1x32xf32> to vector<2x32xf32>
    %c0_133 = arith.constant 0 : index
    %c0_134 = arith.constant 0 : index
    %302 = vector.load %arg17[%c0_133, %c0_134] : memref<1x32xf32, #tpu.memory_space<vmem>>, vector<1x32xf32>
    %c0_135 = arith.constant 0 : index
    %c0_136 = arith.constant 0 : index
    %303 = vector.load %arg18[%c0_135, %c0_136] : memref<1x32xf32, #tpu.memory_space<vmem>>, vector<1x32xf32>
    %cst_137 = arith.constant dense<0.000000e+00> : vector<2xf32>
    %304 = vector.multi_reduction <add>, %301, %cst_137 [1] : vector<2x32xf32> to vector<2xf32>
    %305 = vector.shape_cast %304 : vector<2xf32> to vector<2x1xf32>
    %cst_138 = arith.constant 3.200000e+01 : f32
    %306 = vector.broadcast %cst_138 : f32 to vector<2x1xf32>
    %307 = arith.divf %305, %306 : vector<2x1xf32>
    %308 = vector.broadcast %307 : vector<2x1xf32> to vector<2x32xf32>
    %309 = arith.subf %301, %308 : vector<2x32xf32>
    %310 = arith.mulf %309, %309 : vector<2x32xf32>
    %cst_139 = arith.constant dense<0.000000e+00> : vector<2xf32>
    %311 = vector.multi_reduction <add>, %310, %cst_139 [1] : vector<2x32xf32> to vector<2xf32>
    %312 = vector.shape_cast %311 : vector<2xf32> to vector<2x1xf32>
    %cst_140 = arith.constant 3.200000e+01 : f32
    %313 = vector.broadcast %cst_140 : f32 to vector<2x1xf32>
    %314 = arith.divf %312, %313 : vector<2x1xf32>
    %315 = vector.broadcast %307 : vector<2x1xf32> to vector<2x32xf32>
    %316 = arith.subf %301, %315 : vector<2x32xf32>
    %cst_141 = arith.constant 9.99999974E-6 : f32
    %317 = vector.broadcast %cst_141 : f32 to vector<2x1xf32>
    %318 = arith.addf %314, %317 : vector<2x1xf32>
    %319 = math.rsqrt %318 : vector<2x1xf32>
    %320 = vector.broadcast %319 : vector<2x1xf32> to vector<2x32xf32>
    %321 = arith.mulf %316, %320 : vector<2x32xf32>
    %322 = vector.broadcast %302 : vector<1x32xf32> to vector<2x32xf32>
    %323 = arith.mulf %321, %322 : vector<2x32xf32>
    %324 = vector.broadcast %303 : vector<1x32xf32> to vector<2x32xf32>
    %325 = arith.addf %323, %324 : vector<2x32xf32>
    %c0_142 = arith.constant 0 : index
    %c0_143 = arith.constant 0 : index
    %326 = vector.load %arg19[%c0_142, %c0_143] : memref<2x32xf32, #tpu.memory_space<vmem>>, vector<2x32xf32>
    tpu.vector_store %arg19[%c0_142, %c0_143], %325 {strides = array<i32>} : memref<2x32xf32, #tpu.memory_space<vmem>>, vector<2x32xf32>,
    return
  }
  func.func @transform_0(%arg0: i32) -> (i32, i32) {
    %c0_i32 = arith.constant 0 : i32
    %c0_i32_0 = arith.constant 0 : i32
    %c0_i32_1 = arith.constant 0 : i32
    return %c0_i32, %c0_i32_0 : i32, i32
  }
  func.func @transform_1(%arg0: i32) -> (i32, i32) {
    %c0_i32 = arith.constant 0 : i32
    %c0_i32_0 = arith.constant 0 : i32
    %c0_i32_1 = arith.constant 0 : i32
    return %c0_i32, %c0_i32_0 : i32, i32
  }
  func.func @transform_2(%arg0: i32) -> (i32, i32) {
    %c0_i32 = arith.constant 0 : i32
    %c0_i32_0 = arith.constant 0 : i32
    %c0_i32_1 = arith.constant 0 : i32
    return %c0_i32, %c0_i32_0 : i32, i32
  }
  func.func @transform_3(%arg0: i32) -> (i32, i32) {
    %c0_i32 = arith.constant 0 : i32
    %c0_i32_0 = arith.constant 0 : i32
    %c0_i32_1 = arith.constant 0 : i32
    return %c0_i32, %c0_i32_0 : i32, i32
  }
  func.func @transform_4(%arg0: i32) -> (i32, i32, i32) {
    %c0_i32 = arith.constant 0 : i32
    %c0_i32_0 = arith.constant 0 : i32
    %c0_i32_1 = arith.constant 0 : i32
    %c0_i32_2 = arith.constant 0 : i32
    return %c0_i32, %c0_i32_0, %c0_i32_1 : i32, i32, i32
  }
  func.func @transform_5(%arg0: i32) -> (i32, i32, i32) {
    %c0_i32 = arith.constant 0 : i32
    %c0_i32_0 = arith.constant 0 : i32
    %c0_i32_1 = arith.constant 0 : i32
    %c0_i32_2 = arith.constant 0 : i32
    return %c0_i32, %c0_i32_0, %c0_i32_1 : i32, i32, i32
  }
  func.func @transform_6(%arg0: i32) -> (i32, i32, i32) {
    %c0_i32 = arith.constant 0 : i32
    %c0_i32_0 = arith.constant 0 : i32
    %c0_i32_1 = arith.constant 0 : i32
    %c0_i32_2 = arith.constant 0 : i32
    return %c0_i32, %c0_i32_0, %c0_i32_1 : i32, i32, i32
  }
  func.func @transform_7(%arg0: i32) -> (i32, i32, i32) {
    %c0_i32 = arith.constant 0 : i32
    %c0_i32_0 = arith.constant 0 : i32
    %c0_i32_1 = arith.constant 0 : i32
    %c0_i32_2 = arith.constant 0 : i32
    return %c0_i32, %c0_i32_0, %c0_i32_1 : i32, i32, i32
  }
  func.func @transform_8(%arg0: i32) -> (i32, i32, i32) {
    %c0_i32 = arith.constant 0 : i32
    %c0_i32_0 = arith.constant 0 : i32
    %c0_i32_1 = arith.constant 0 : i32
    %c0_i32_2 = arith.constant 0 : i32
    return %c0_i32, %c0_i32_0, %c0_i32_1 : i32, i32, i32
  }
  func.func @transform_9(%arg0: i32) -> (i32, i32, i32) {
    %c0_i32 = arith.constant 0 : i32
    %c0_i32_0 = arith.constant 0 : i32
    %c0_i32_1 = arith.constant 0 : i32
    %c0_i32_2 = arith.constant 0 : i32
    return %c0_i32, %c0_i32_0, %c0_i32_1 : i32, i32, i32
  }
  func.func @transform_10(%arg0: i32) -> (i32, i32, i32) {
    %c0_i32 = arith.constant 0 : i32
    %c0_i32_0 = arith.constant 0 : i32
    %c0_i32_1 = arith.constant 0 : i32
    %c0_i32_2 = arith.constant 0 : i32
    return %c0_i32, %c0_i32_0, %c0_i32_1 : i32, i32, i32
  }
  func.func @transform_11(%arg0: i32) -> (i32, i32, i32) {
    %c0_i32 = arith.constant 0 : i32
    %c0_i32_0 = arith.constant 0 : i32
    %c0_i32_1 = arith.constant 0 : i32
    %c0_i32_2 = arith.constant 0 : i32
    return %c0_i32, %c0_i32_0, %c0_i32_1 : i32, i32, i32
  }
  func.func @transform_12(%arg0: i32) -> (i32, i32, i32) {
    %c0_i32 = arith.constant 0 : i32
    %c0_i32_0 = arith.constant 0 : i32
    %c0_i32_1 = arith.constant 0 : i32
    %c0_i32_2 = arith.constant 0 : i32
    return %c0_i32, %c0_i32_0, %c0_i32_1 : i32, i32, i32
  }
  func.func @transform_13(%arg0: i32) -> (i32, i32, i32) {
    %c0_i32 = arith.constant 0 : i32
    %c0_i32_0 = arith.constant 0 : i32
    %c0_i32_1 = arith.constant 0 : i32
    %c0_i32_2 = arith.constant 0 : i32
    return %c0_i32, %c0_i32_0, %c0_i32_1 : i32, i32, i32
  }
  func.func @transform_14(%arg0: i32) -> (i32, i32, i32) {
    %c0_i32 = arith.constant 0 : i32
    %c0_i32_0 = arith.constant 0 : i32
    %c0_i32_1 = arith.constant 0 : i32
    %c0_i32_2 = arith.constant 0 : i32
    return %c0_i32, %c0_i32_0, %c0_i32_1 : i32, i32, i32
  }
  func.func @transform_15(%arg0: i32) -> (i32, i32, i32) {
    %c0_i32 = arith.constant 0 : i32
    %c0_i32_0 = arith.constant 0 : i32
    %c0_i32_1 = arith.constant 0 : i32
    %c0_i32_2 = arith.constant 0 : i32
    return %c0_i32, %c0_i32_0, %c0_i32_1 : i32, i32, i32
  }
  func.func @transform_16(%arg0: i32) -> (i32, i32) {
    %c0_i32 = arith.constant 0 : i32
    %c0_i32_0 = arith.constant 0 : i32
    %c0_i32_1 = arith.constant 0 : i32
    return %c0_i32, %c0_i32_0 : i32, i32
  }
  func.func @transform_17(%arg0: i32) -> (i32, i32) {
    %c0_i32 = arith.constant 0 : i32
    %c0_i32_0 = arith.constant 0 : i32
    %c0_i32_1 = arith.constant 0 : i32
    return %c0_i32, %c0_i32_0 : i32, i32
  }
  func.func @transform_18(%arg0: i32) -> (i32, i32) {
    %c0_i32 = arith.constant 0 : i32
    %c0_i32_0 = arith.constant 0 : i32
    %c0_i32_1 = arith.constant 0 : i32
    return %c0_i32, %c0_i32_0 : i32, i32
  }
}

</mosaic_0001>

<llo_original>
// kernel: tpu_custom_call.1
$region0: #{tpu_custom_call.1}
  #allocation0 [shape = 'u32[]', space=smem, size = 0x4, offset = 0x4, fixed_abs, tag = 'smem constant byte address 0x4 - core index']
  #allocation1 [shape = 'u32[72,128]{1,0:T(1,128)}', space=vmem, size = 0x9000, scoped, tag = 'internal scratch']
  %s0 = inlined_call_operand.vmem [shape: s32[16,1], index: 0, kind: input, shape index: {}]
  %s1 = inlined_call_operand.vmem [shape: f32[2,8], index: 1, kind: input, shape index: {}]
  %s2 = inlined_call_operand.vmem [shape: f32[64,32], index: 2, kind: input, shape index: {}]
  %s3 = inlined_call_operand.vmem [shape: f32[8,32], index: 3, kind: input, shape index: {}]
  %s4 = inlined_call_operand.vmem [shape: f32[2,1,32], index: 4, kind: input, shape index: {}]
  %s5 = inlined_call_operand.vmem [shape: f32[2,1,32], index: 5, kind: input, shape index: {}]
  %s6 = inlined_call_operand.vmem [shape: f32[2,32,96], index: 6, kind: input, shape index: {}]
  %s7 = inlined_call_operand.vmem [shape: f32[2,1,96], index: 7, kind: input, shape index: {}]
  %s8 = inlined_call_operand.vmem [shape: f32[2,32,32], index: 8, kind: input, shape index: {}]
  %s9 = inlined_call_operand.vmem [shape: f32[2,1,32], index: 9, kind: input, shape index: {}]
  %s10 = inlined_call_operand.vmem [shape: f32[2,1,32], index: 10, kind: input, shape index: {}]
  %s11 = inlined_call_operand.vmem [shape: f32[2,1,32], index: 11, kind: input, shape index: {}]
  %s12 = inlined_call_operand.vmem [shape: f32[2,32,128], index: 12, kind: input, shape index: {}]
  %s13 = inlined_call_operand.vmem [shape: f32[2,1,128], index: 13, kind: input, shape index: {}]
  %s14 = inlined_call_operand.vmem [shape: f32[2,128,32], index: 14, kind: input, shape index: {}]
  %s15 = inlined_call_operand.vmem [shape: f32[2,1,32], index: 15, kind: input, shape index: {}]
  %s16 = inlined_call_operand.vmem [shape: f32[1,32], index: 16, kind: input, shape index: {}]
  %s17 = inlined_call_operand.vmem [shape: f32[1,32], index: 17, kind: input, shape index: {}]
  %s18 = inlined_call_operand.hbm [shape: f32[2,32], index: 18, kind: output, shape index: {}]
  %s19 = sld [smem:[#allocation0]]
  $region82: #{tpu_custom_call.1} parent=0
    _
  %s21 = ssub.s32 1, %s19
  %s22 = scalar_select 0, %s21, %s19
  $region1: #{tpu_custom_call.1} parent=0
    #allocation2 [shape = 'u8[1024]{0}', space=vmem, size = 0x400, scoped, tag = 'output window, operand 0, single buffered']
    #allocation3 [shape = 's32[1]{0}', space=sflag, size = 0x4, scoped, tag = 'scoped memory for tpu_custom_call.1']
    %23 = vsyncpa [#allocation3], 0
    // Predicated region
    $region2: #{tpu_custom_call.1} parent=1 // pred_check
      _
    $region3: #{tpu_custom_call.1} parent=1 // pred_check_branch
      %25 = sbr.rel (0) target = $region5
    $region4: #{tpu_custom_call.1} parent=1 // pred_region
      _
    $region5: #{tpu_custom_call.1} parent=1 // pred_fallthru
      _
    // Predicated region
    $region6: #{tpu_custom_call.1} parent=1 // pred_check
      _
    $region7: #{tpu_custom_call.1} parent=1 // pred_check_branch
      %27 = sbr.rel (0) target = $region9
    $region8: #{tpu_custom_call.1} parent=1 // pred_region
      _
    $region9: #{tpu_custom_call.1} parent=1 // pred_fallthru
      _
    // Predicated region
    $region10: #{tpu_custom_call.1} parent=1 // pred_check
      _
    $region11: #{tpu_custom_call.1} parent=1 // pred_check_branch
      %29 = sbr.rel (0) target = $region13
    $region12: #{tpu_custom_call.1} parent=1 // pred_region
      _
    $region13: #{tpu_custom_call.1} parent=1 // pred_fallthru
      _
    // Predicated region
    $region14: #{tpu_custom_call.1} parent=1 // pred_check
      _
    $region15: #{tpu_custom_call.1} parent=1 // pred_check_branch
      %31 = sbr.rel (0) target = $region17
    $region16: #{tpu_custom_call.1} parent=1 // pred_region
      _
    $region17: #{tpu_custom_call.1} parent=1 // pred_fallthru
      _
    // Predicated region
    $region18: #{tpu_custom_call.1} parent=1 // pred_check
      _
    $region19: #{tpu_custom_call.1} parent=1 // pred_check_branch
      %33 = sbr.rel (0) target = $region21
    $region20: #{tpu_custom_call.1} parent=1 // pred_region
      _
    $region21: #{tpu_custom_call.1} parent=1 // pred_fallthru
      _
    // Predicated region
    $region22: #{tpu_custom_call.1} parent=1 // pred_check
      _
    $region23: #{tpu_custom_call.1} parent=1 // pred_check_branch
      %35 = sbr.rel (0) target = $region25
    $region24: #{tpu_custom_call.1} parent=1 // pred_region
      _
    $region25: #{tpu_custom_call.1} parent=1 // pred_fallthru
      _
    // Predicated region
    $region26: #{tpu_custom_call.1} parent=1 // pred_check
      _
    $region27: #{tpu_custom_call.1} parent=1 // pred_check_branch
      %37 = sbr.rel (0) target = $region29
    $region28: #{tpu_custom_call.1} parent=1 // pred_region
      _
    $region29: #{tpu_custom_call.1} parent=1 // pred_fallthru
      _
    // Predicated region
    $region30: #{tpu_custom_call.1} parent=1 // pred_check
      _
    $region31: #{tpu_custom_call.1} parent=1 // pred_check_branch
      %39 = sbr.rel (0) target = $region33
    $region32: #{tpu_custom_call.1} parent=1 // pred_region
      _
    $region33: #{tpu_custom_call.1} parent=1 // pred_fallthru
      _
    // Predicated region
    $region34: #{tpu_custom_call.1} parent=1 // pred_check
      _
    $region35: #{tpu_custom_call.1} parent=1 // pred_check_branch
      %41 = sbr.rel (0) target = $region37
    $region36: #{tpu_custom_call.1} parent=1 // pred_region
      _
    $region37: #{tpu_custom_call.1} parent=1 // pred_fallthru
      _
    // Predicated region
    $region38: #{tpu_custom_call.1} parent=1 // pred_check
      _
    $region39: #{tpu_custom_call.1} parent=1 // pred_check_branch
      %43 = sbr.rel (0) target = $region41
    $region40: #{tpu_custom_call.1} parent=1 // pred_region
      _
    $region41: #{tpu_custom_call.1} parent=1 // pred_fallthru
      _
    // Predicated region
    $region42: #{tpu_custom_call.1} parent=1 // pred_check
      _
    $region43: #{tpu_custom_call.1} parent=1 // pred_check_branch
      %45 = sbr.rel (0) target = $region45
    $region44: #{tpu_custom_call.1} parent=1 // pred_region
      _
    $region45: #{tpu_custom_call.1} parent=1 // pred_fallthru
      _
    // Predicated region
    $region46: #{tpu_custom_call.1} parent=1 // pred_check
      _
    $region47: #{tpu_custom_call.1} parent=1 // pred_check_branch
      %47 = sbr.rel (0) target = $region49
    $region48: #{tpu_custom_call.1} parent=1 // pred_region
      _
    $region49: #{tpu_custom_call.1} parent=1 // pred_fallthru
      _
    // Predicated region
    $region50: #{tpu_custom_call.1} parent=1 // pred_check
      _
    $region51: #{tpu_custom_call.1} parent=1 // pred_check_branch
      %49 = sbr.rel (0) target = $region53
    $region52: #{tpu_custom_call.1} parent=1 // pred_region
      _
    $region53: #{tpu_custom_call.1} parent=1 // pred_fallthru
      _
    // Predicated region
    $region54: #{tpu_custom_call.1} parent=1 // pred_check
      _
    $region55: #{tpu_custom_call.1} parent=1 // pred_check_branch
      %51 = sbr.rel (0) target = $region57
    $region56: #{tpu_custom_call.1} parent=1 // pred_region
      _
    $region57: #{tpu_custom_call.1} parent=1 // pred_fallthru
      _
    // Predicated region
    $region58: #{tpu_custom_call.1} parent=1 // pred_check
      _
    $region59: #{tpu_custom_call.1} parent=1 // pred_check_branch
      %53 = sbr.rel (0) target = $region61
    $region60: #{tpu_custom_call.1} parent=1 // pred_region
      _
    $region61: #{tpu_custom_call.1} parent=1 // pred_fallthru
      _
    // Predicated region
    $region62: #{tpu_custom_call.1} parent=1 // pred_check
      _
    $region63: #{tpu_custom_call.1} parent=1 // pred_check_branch
      %55 = sbr.rel (0) target = $region65
    $region64: #{tpu_custom_call.1} parent=1 // pred_region
      _
    $region65: #{tpu_custom_call.1} parent=1 // pred_fallthru
      _
    // Predicated region
    $region66: #{tpu_custom_call.1} parent=1 // pred_check
      _
    $region67: #{tpu_custom_call.1} parent=1 // pred_check_branch
      %57 = sbr.rel (0) target = $region69
    $region68: #{tpu_custom_call.1} parent=1 // pred_region
      _
    $region69: #{tpu_custom_call.1} parent=1 // pred_fallthru
      _
    // Predicated region
    $region70: #{tpu_custom_call.1} parent=1 // pred_check
      _
    $region71: #{tpu_custom_call.1} parent=1 // pred_check_branch
      %59 = sbr.rel (0) target = $region73
    $region72: #{tpu_custom_call.1} parent=1 // pred_region
      _
    $region73: #{tpu_custom_call.1} parent=1 // pred_fallthru
      _
    %v60 = vld [vmem:[%s0] sm:$0xff]
    %v61 = vld [vmem:[%s0 + $0x8] sm:$0xff]
    %v62 = vlaneseq
    %v63 = vand.u32 %v62, 127
    %64 = vset.pattern.permute.xlu0 0
    %65 = vperm.xlu0 %64, %v60
    %v66 = vpop.permute.xlu0 %65
    %67 = vset.pattern.permute.xlu0 0
    %68 = vperm.xlu0 %67, %v61
    %v69 = vpop.permute.xlu0 %68
    %vm70 = vcmp.eq.s32.totalorder %v66, %v63
    %vm71 = vcmp.eq.s32.totalorder %v69, %v63
    %v72 = vsel %vm70, 1, 0
    %v73 = vsel %vm71, 1, 0
    %v74 = vcvt.s32.f32 %v72
    %v75 = vcvt.s32.f32 %v73
    %v76 = vld [vmem:[%s3] sm:$0xff]
    %v77 = vld [vmem:[%s2] sm:$0xff]
    %v78 = vld [vmem:[%s2 + $0x8] sm:$0xff]
    %v79 = vld [vmem:[%s2 + $0x10] sm:$0xff]
    %v80 = vld [vmem:[%s2 + $0x18] sm:$0xff]
    %v81 = vld [vmem:[%s2 + $0x20] sm:$0xff]
    %v82 = vld [vmem:[%s2 + $0x28] sm:$0xff]
    %v83 = vld [vmem:[%s2 + $0x30] sm:$0xff]
    %v84 = vld [vmem:[%s2 + $0x38] sm:$0xff]
    %vm85 = vcmask 523264
    %v87 = vsel %vm85, %v74, 0
    %v90 = vsel %vm85, %v75, 0
    %92 = vmatpush.msra.mxu0 0.0
    %93 = vmatpush.msra.mxu0 0.0
    %94 = vmatpush.msra.mxu0 0.0
    %95 = vmatpush.msra.mxu0 0.0
    %96 = vmatpush.msra.mxu0 0.0
    %97 = vmatpush.msra.mxu0 0.0
    %98 = vmatpush.msra.mxu0 0.0
    %99 = vmatpush.msra.mxu0 0.0
    %100 = vmatpush.msra.mxu0 %v84
    %101 = vmatpush.msra.mxu0 %v83
    %102 = vmatpush.msra.mxu0 %v82
    %103 = vmatpush.msra.mxu0 %v81
    %104 = vmatpush.msra.mxu0 %v80
    %105 = vmatpush.msra.mxu0 %v79
    %106 = vmatpush.msra.mxu0 %v78
    %107 = vmatpush.msra.mxu0 %v77
    %108 = vmatmul.f32.gmra.mxu0 %v87
    %v109 = vpop.f32.mrf.mxu0
    %v110 = vadd.f32 %v76, %v109
    %111 = vmatmul.f32.gmra.mxu0 %v90
    %v112 = vpop.f32.mrf.mxu0
    %v113 = vadd.f32 %v76, %v112
    %114 = vdwg.mxu0
    %v115 = vlaneseq
    %v116 = vshrl.u32 %v115, 7
    %vm117 = vcmp.le.s32.totalorder %v63, %v116
    %v118 = vld [vmem:[%s1] sm:$0x3]
    %vm119 = vcmp.gt.f32.partialorder %v118, 0.5
    %v120 = vsel %vm119, 1, 0
    %v121 = vrot.slane %v120, 1
    %vm122 = vcmp.ne.s32.totalorder %v121, 0
    %v123 = vsel %vm117, 1, 0
    %vm124 = vcmp.eq.s32.totalorder %v123, 1
    %v125 = vsel %vm122, 1, 0
    %v126 = vperm.slane %v120, 0
    %v127 = vperm.slane %v125, 0
    %vm128 = vcmp.eq.s32.totalorder %v126, 1
    %vm129 = vcmp.eq.s32.totalorder %v127, 1
    %vm130 = vmand %vm124, %vm128
    %vm131 = vmand %vm124, %vm129
    %v132 = vsel %vm130, 0.0, -1e+09
    %v133 = vsel %vm131, 0.0, -1e+09
    %v134 = vld [vmem:[%s4] sm:$0x1]
    %v135 = vld [vmem:[%s5] sm:$0x1]
    %vm136 = vcmask 261120
    %v137 = vsel %vm136, %v110, 0.0
    %138 = vadd.xlane.f32.xlu0 %v137
    %v139 = vpop.xlane.xlu0 %138
    %v140 = vsel %vm136, %v113, 0.0
    %141 = vadd.xlane.f32.xlu0 %v140
    %v142 = vpop.xlane.xlu0 %141
    %v143 = vrcp.pop 32.0
    %v144 = vmul.f32 32.0, %v143
    %v145 = vsub.f32 1.0, %v144
    %v146 = vmul.f32 %v143, %v145
    %v147 = vadd.f32 %v143, %v146
    %vm148 = vweird.f32 %v143
    %v149 = vsel %vm148, %v143, %v147
    %v150 = vmul.f32 %v139, %v149
    %v151 = vmul.f32 %v142, %v149
    %v152 = vsub.f32 %v110, %v150
    %v153 = vsub.f32 %v113, %v151
    %v154 = vmul.f32 %v152, %v152
    %v155 = vmul.f32 %v153, %v153
    %v156 = vsel %vm136, %v154, 0.0
    %157 = vadd.xlane.f32.xlu0 %v156
    %v158 = vpop.xlane.xlu0 %157
    %v159 = vsel %vm136, %v155, 0.0
    %160 = vadd.xlane.f32.xlu0 %v159
    %v161 = vpop.xlane.xlu0 %160
    %v162 = vmul.f32 %v158, %v149
    %v163 = vmul.f32 %v161, %v149
    %v164 = vadd.f32 %v162, 1e-05
    %v165 = vadd.f32 %v163, 1e-05
    %v166 = vrsqrt.pop %v164
    %v167 = vmul.f32 %v166, %v164
    %v168 = vmul.f32 %v167, %v166
    %v169 = vmul.f32 0.5, %v168
    %v170 = vsub.f32 1.5, %v169
    %v171 = vmul.f32 %v166, %v170
    %vm172 = vweird.f32 %v164
    %vm173 = vweird.f32 %v166
    %vm174 = vmor %vm172, %vm173
    %v175 = vsel %vm174, %v166, %v171
    %v176 = vrsqrt.pop %v165
    %v177 = vmul.f32 %v176, %v165
    %v178 = vmul.f32 %v177, %v176
    %v179 = vmul.f32 0.5, %v178
    %v180 = vsub.f32 1.5, %v179
    %v181 = vmul.f32 %v176, %v180
    %vm182 = vweird.f32 %v165
    %vm183 = vweird.f32 %v176
    %vm184 = vmor %vm182, %vm183
    %v185 = vsel %vm184, %v176, %v181
    %v186 = vmul.f32 %v152, %v175
    %v187 = vmul.f32 %v153, %v185
    %v189 = vperm.slane %v134, 0
    %v191 = vmul.f32 %v186, %v189
    %v192 = vmul.f32 %v187, %v189
    %v194 = vperm.slane %v135, 0
    %v196 = vadd.f32 %v191, %v194
    %v197 = vadd.f32 %v192, %v194
    %v198 = vld [vmem:[%s6] sm:$0xff]
    %v199 = vld [vmem:[%s6 + $0x8] sm:$0xff]
    %v200 = vld [vmem:[%s6 + $0x10] sm:$0xff]
    %v201 = vld [vmem:[%s6 + $0x18] sm:$0xff]
    %v202 = vld [vmem:[%s7] sm:$0x1]
    %v204 = vperm.slane %v202, 0
    %v207 = vsel %vm136, %v196, 0
    %v210 = vsel %vm136, %v197, 0
    %212 = vmatpush.msra.mxu0 0.0
    %213 = vmatpush.msra.mxu0 0.0
    %214 = vmatpush.msra.mxu0 0.0
    %215 = vmatpush.msra.mxu0 0.0
    %216 = vmatpush.msra.mxu0 0.0
    %217 = vmatpush.msra.mxu0 0.0
    %218 = vmatpush.msra.mxu0 0.0
    %219 = vmatpush.msra.mxu0 0.0
    %220 = vmatpush.msra.mxu0 0.0
    %221 = vmatpush.msra.mxu0 0.0
    %222 = vmatpush.msra.mxu0 0.0
    %223 = vmatpush.msra.mxu0 0.0
    %224 = vmatpush.msra.mxu0 %v201
    %225 = vmatpush.msra.mxu0 %v200
    %226 = vmatpush.msra.mxu0 %v199
    %227 = vmatpush.msra.mxu0 %v198
    %228 = vmatmul.f32.gmra.mxu0 %v207
    %v229 = vpop.f32.mrf.mxu0
    %v230 = vadd.f32 %v204, %v229
    %231 = vmatmul.f32.gmra.mxu0 %v210
    %v232 = vpop.f32.mrf.mxu0
    %v233 = vadd.f32 %v204, %v232
    %234 = vdwg.mxu0
    %236 = vrot.lane.b32.xlu0 %v230, 96
    %v237 = vpop.permute.xlu0 %236
    %vm238 = vcmask 130048
    %v239 = vsel %vm238, %v230, 0
    %v241 = vsel %vm238, %v237, 0
    %243 = vmatpush.xpose.msra.mxu0 0.0
    %244 = vmatpush.xpose.msra.mxu0 0.0
    %245 = vmatpush.xpose.msra.mxu0 0.0
    %246 = vmatpush.xpose.msra.mxu0 0.0
    %247 = vmatpush.xpose.msra.mxu0 0.0
    %248 = vmatpush.xpose.msra.mxu0 0.0
    %249 = vmatpush.xpose.msra.mxu0 0.0
    %250 = vmatpush.xpose.msra.mxu0 0.0
    %251 = vmatpush.xpose.msra.mxu0 0.0
    %252 = vmatpush.xpose.msra.mxu0 0.0
    %253 = vmatpush.xpose.msra.mxu0 0.0
    %254 = vmatpush.xpose.msra.mxu0 0.0
    %255 = vmatpush.xpose.msra.mxu0 0.0
    %256 = vmatpush.xpose.msra.mxu0 0.0
    %257 = vmatpush.xpose.msra.mxu0 0.0
    %258 = vmatpush.xpose.msra.mxu0 %v241
    %259 = vmatmul.f32.gmra.mxu0 %v239
    %v260 = vpop.f32.mrf.mxu0
    %v261 = vadd.f32 %v132, %v260
    %262 = vdwg.mxu0
    %264 = vrot.lane.b32.xlu0 %v233, 96
    %v265 = vpop.permute.xlu0 %264
    %v266 = vsel %vm238, %v233, 0
    %v268 = vsel %vm238, %v265, 0
    %270 = vmatpush.xpose.msra.mxu0 0.0
    %271 = vmatpush.xpose.msra.mxu0 0.0
    %272 = vmatpush.xpose.msra.mxu0 0.0
    %273 = vmatpush.xpose.msra.mxu0 0.0
    %274 = vmatpush.xpose.msra.mxu0 0.0
    %275 = vmatpush.xpose.msra.mxu0 0.0
    %276 = vmatpush.xpose.msra.mxu0 0.0
    %277 = vmatpush.xpose.msra.mxu0 0.0
    %278 = vmatpush.xpose.msra.mxu0 0.0
    %279 = vmatpush.xpose.msra.mxu0 0.0
    %280 = vmatpush.xpose.msra.mxu0 0.0
    %281 = vmatpush.xpose.msra.mxu0 0.0
    %282 = vmatpush.xpose.msra.mxu0 0.0
    %283 = vmatpush.xpose.msra.mxu0 0.0
    %284 = vmatpush.xpose.msra.mxu0 0.0
    %285 = vmatpush.xpose.msra.mxu0 %v268
    %286 = vmatmul.f32.gmra.mxu0 %v266
    %v287 = vpop.f32.mrf.mxu0
    %v288 = vadd.f32 %v133, %v287
    %289 = vdwg.mxu0
    %vm290 = vcmask 64512
    %v291 = vsel %vm290, %v261, -inf
    %292 = vmax.xlane.f32.xlu0 %v291
    %v293 = vpop.xlane.xlu0 %292
    %v294 = vsel %vm290, %v288, -inf
    %295 = vmax.xlane.f32.xlu0 %v294
    %v296 = vpop.xlane.xlu0 %295
    %v297 = vsub.f32 %v261, %v293
    %v298 = vsub.f32 %v288, %v296
    %v299 = vmul.f32 %v297, 1.442695
    %v300 = vpow.pop %v299
    %v301 = vmul.f32 %v298, 1.442695
    %v302 = vpow.pop %v301
    %v303 = vsel %vm290, %v300, 0.0
    %304 = vadd.xlane.f32.xlu0 %v303
    %v305 = vpop.xlane.xlu0 %304
    %v306 = vsel %vm290, %v302, 0.0
    %307 = vadd.xlane.f32.xlu0 %v306
    %v308 = vpop.xlane.xlu0 %307
    %v309 = vrcp.pop %v305
    %v310 = vrcp.pop %v308
    %v311 = vmul.f32 %v300, %v309
    %v312 = vmul.f32 %v302, %v310
    %313 = vrot.lane.b32.xlu0 %v230, 64
    %v314 = vpop.permute.xlu0 %313
    %v317 = vsel %vm290, %v311, 0
    %319 = vmatpush.msra.mxu0 0.0
    %320 = vmatpush.msra.mxu0 0.0
    %321 = vmatpush.msra.mxu0 0.0
    %322 = vmatpush.msra.mxu0 0.0
    %323 = vmatpush.msra.mxu0 0.0
    %324 = vmatpush.msra.mxu0 0.0
    %325 = vmatpush.msra.mxu0 0.0
    %326 = vmatpush.msra.mxu0 0.0
    %327 = vmatpush.msra.mxu0 0.0
    %328 = vmatpush.msra.mxu0 0.0
    %329 = vmatpush.msra.mxu0 0.0
    %330 = vmatpush.msra.mxu0 0.0
    %331 = vmatpush.msra.mxu0 0.0
    %332 = vmatpush.msra.mxu0 0.0
    %333 = vmatpush.msra.mxu0 0.0
    %334 = vmatpush.msra.mxu0 %v314
    %335 = vmatmul.f32.gmra.mxu0 %v317
    %v336 = vpop.f32.mrf.mxu0
    %v337 = vadd.f32 0.0, %v336
    %338 = vdwg.mxu0
    %339 = vrot.lane.b32.xlu0 %v233, 64
    %v340 = vpop.permute.xlu0 %339
    %v343 = vsel %vm290, %v312, 0
    %345 = vmatpush.msra.mxu0 0.0
    %346 = vmatpush.msra.mxu0 0.0
    %347 = vmatpush.msra.mxu0 0.0
    %348 = vmatpush.msra.mxu0 0.0
    %349 = vmatpush.msra.mxu0 0.0
    %350 = vmatpush.msra.mxu0 0.0
    %351 = vmatpush.msra.mxu0 0.0
    %352 = vmatpush.msra.mxu0 0.0
    %353 = vmatpush.msra.mxu0 0.0
    %354 = vmatpush.msra.mxu0 0.0
    %355 = vmatpush.msra.mxu0 0.0
    %356 = vmatpush.msra.mxu0 0.0
    %357 = vmatpush.msra.mxu0 0.0
    %358 = vmatpush.msra.mxu0 0.0
    %359 = vmatpush.msra.mxu0 0.0
    %360 = vmatpush.msra.mxu0 %v340
    %361 = vmatmul.f32.gmra.mxu0 %v343
    %v362 = vpop.f32.mrf.mxu0
    %v363 = vadd.f32 0.0, %v362
    %364 = vdwg.mxu0
    %365 = vrot.lane.b32.xlu0 %v230, 112
    %v366 = vpop.permute.xlu0 %365
    %367 = vrot.lane.b32.xlu0 %v230, 80
    %v368 = vpop.permute.xlu0 %367
    %v369 = vsel %vm238, %v366, 0
    %v371 = vsel %vm238, %v368, 0
    %373 = vmatpush.xpose.msra.mxu0 0.0
    %374 = vmatpush.xpose.msra.mxu0 0.0
    %375 = vmatpush.xpose.msra.mxu0 0.0
    %376 = vmatpush.xpose.msra.mxu0 0.0
    %377 = vmatpush.xpose.msra.mxu0 0.0
    %378 = vmatpush.xpose.msra.mxu0 0.0
    %379 = vmatpush.xpose.msra.mxu0 0.0
    %380 = vmatpush.xpose.msra.mxu0 0.0
    %381 = vmatpush.xpose.msra.mxu0 0.0
    %382 = vmatpush.xpose.msra.mxu0 0.0
    %383 = vmatpush.xpose.msra.mxu0 0.0
    %384 = vmatpush.xpose.msra.mxu0 0.0
    %385 = vmatpush.xpose.msra.mxu0 0.0
    %386 = vmatpush.xpose.msra.mxu0 0.0
    %387 = vmatpush.xpose.msra.mxu0 0.0
    %388 = vmatpush.xpose.msra.mxu0 %v371
    %389 = vmatmul.f32.gmra.mxu0 %v369
    %v390 = vpop.f32.mrf.mxu0
    %v391 = vadd.f32 %v132, %v390
    %392 = vdwg.mxu0
    %393 = vrot.lane.b32.xlu0 %v233, 112
    %v394 = vpop.permute.xlu0 %393
    %395 = vrot.lane.b32.xlu0 %v233, 80
    %v396 = vpop.permute.xlu0 %395
    %v397 = vsel %vm238, %v394, 0
    %v399 = vsel %vm238, %v396, 0
    %401 = vmatpush.xpose.msra.mxu0 0.0
    %402 = vmatpush.xpose.msra.mxu0 0.0
    %403 = vmatpush.xpose.msra.mxu0 0.0
    %404 = vmatpush.xpose.msra.mxu0 0.0
    %405 = vmatpush.xpose.msra.mxu0 0.0
    %406 = vmatpush.xpose.msra.mxu0 0.0
    %407 = vmatpush.xpose.msra.mxu0 0.0
    %408 = vmatpush.xpose.msra.mxu0 0.0
    %409 = vmatpush.xpose.msra.mxu0 0.0
    %410 = vmatpush.xpose.msra.mxu0 0.0
    %411 = vmatpush.xpose.msra.mxu0 0.0
    %412 = vmatpush.xpose.msra.mxu0 0.0
    %413 = vmatpush.xpose.msra.mxu0 0.0
    %414 = vmatpush.xpose.msra.mxu0 0.0
    %415 = vmatpush.xpose.msra.mxu0 0.0
    %416 = vmatpush.xpose.msra.mxu0 %v399
    %417 = vmatmul.f32.gmra.mxu0 %v397
    %v418 = vpop.f32.mrf.mxu0
    %v419 = vadd.f32 %v133, %v418
    %420 = vdwg.mxu0
    %v421 = vsel %vm290, %v391, -inf
    %422 = vmax.xlane.f32.xlu0 %v421
    %v423 = vpop.xlane.xlu0 %422
    %v424 = vsel %vm290, %v419, -inf
    %425 = vmax.xlane.f32.xlu0 %v424
    %v426 = vpop.xlane.xlu0 %425
    %v427 = vsub.f32 %v391, %v423
    %v428 = vsub.f32 %v419, %v426
    %v429 = vmul.f32 %v427, 1.442695
    %v430 = vpow.pop %v429
    %v431 = vmul.f32 %v428, 1.442695
    %v432 = vpow.pop %v431
    %v433 = vsel %vm290, %v430, 0.0
    %434 = vadd.xlane.f32.xlu0 %v433
    %v435 = vpop.xlane.xlu0 %434
    %v436 = vsel %vm290, %v432, 0.0
    %437 = vadd.xlane.f32.xlu0 %v436
    %v438 = vpop.xlane.xlu0 %437
    %v439 = vrcp.pop %v435
    %v440 = vrcp.pop %v438
    %v441 = vmul.f32 %v430, %v439
    %v442 = vmul.f32 %v432, %v440
    %443 = vrot.lane.b32.xlu0 %v230, 48
    %v444 = vpop.permute.xlu0 %443
    %v447 = vsel %vm290, %v441, 0
    %449 = vmatpush.msra.mxu0 0.0
    %450 = vmatpush.msra.mxu0 0.0
    %451 = vmatpush.msra.mxu0 0.0
    %452 = vmatpush.msra.mxu0 0.0
    %453 = vmatpush.msra.mxu0 0.0
    %454 = vmatpush.msra.mxu0 0.0
    %455 = vmatpush.msra.mxu0 0.0
    %456 = vmatpush.msra.mxu0 0.0
    %457 = vmatpush.msra.mxu0 0.0
    %458 = vmatpush.msra.mxu0 0.0
    %459 = vmatpush.msra.mxu0 0.0
    %460 = vmatpush.msra.mxu0 0.0
    %461 = vmatpush.msra.mxu0 0.0
    %462 = vmatpush.msra.mxu0 0.0
    %463 = vmatpush.msra.mxu0 0.0
    %464 = vmatpush.msra.mxu0 %v444
    %465 = vmatmul.f32.gmra.mxu0 %v447
    %v466 = vpop.f32.mrf.mxu0
    %v467 = vadd.f32 0.0, %v466
    %468 = vdwg.mxu0
    %469 = vrot.lane.b32.xlu0 %v233, 48
    %v470 = vpop.permute.xlu0 %469
    %v473 = vsel %vm290, %v442, 0
    %475 = vmatpush.msra.mxu0 0.0
    %476 = vmatpush.msra.mxu0 0.0
    %477 = vmatpush.msra.mxu0 0.0
    %478 = vmatpush.msra.mxu0 0.0
    %479 = vmatpush.msra.mxu0 0.0
    %480 = vmatpush.msra.mxu0 0.0
    %481 = vmatpush.msra.mxu0 0.0
    %482 = vmatpush.msra.mxu0 0.0
    %483 = vmatpush.msra.mxu0 0.0
    %484 = vmatpush.msra.mxu0 0.0
    %485 = vmatpush.msra.mxu0 0.0
    %486 = vmatpush.msra.mxu0 0.0
    %487 = vmatpush.msra.mxu0 0.0
    %488 = vmatpush.msra.mxu0 0.0
    %489 = vmatpush.msra.mxu0 0.0
    %490 = vmatpush.msra.mxu0 %v470
    %491 = vmatmul.f32.gmra.mxu0 %v473
    %v492 = vpop.f32.mrf.mxu0
    %v493 = vadd.f32 0.0, %v492
    %494 = vdwg.mxu0
    %497 = vrot.lane.b32.xlu0 %v467, 16
    %v498 = vpop.permute.xlu0 %497
    %499 = vrot.lane.b32.xlu0 %v493, 16
    %v500 = vpop.permute.xlu0 %499
    %v503 = vsel %vm238, %v337, %v498
    %v504 = vsel %vm238, %v363, %v500
    %v505 = vld [vmem:[%s8] sm:$0xff]
    %v506 = vld [vmem:[%s8 + $0x8] sm:$0xff]
    %v507 = vld [vmem:[%s8 + $0x10] sm:$0xff]
    %v508 = vld [vmem:[%s8 + $0x18] sm:$0xff]
    %v509 = vld [vmem:[%s9] sm:$0x1]
    %v511 = vperm.slane %v509, 0
    %v514 = vsel %vm136, %v503, 0
    %v517 = vsel %vm136, %v504, 0
    %519 = vmatpush.msra.mxu0 0.0
    %520 = vmatpush.msra.mxu0 0.0
    %521 = vmatpush.msra.mxu0 0.0
    %522 = vmatpush.msra.mxu0 0.0
    %523 = vmatpush.msra.mxu0 0.0
    %524 = vmatpush.msra.mxu0 0.0
    %525 = vmatpush.msra.mxu0 0.0
    %526 = vmatpush.msra.mxu0 0.0
    %527 = vmatpush.msra.mxu0 0.0
    %528 = vmatpush.msra.mxu0 0.0
    %529 = vmatpush.msra.mxu0 0.0
    %530 = vmatpush.msra.mxu0 0.0
    %531 = vmatpush.msra.mxu0 %v508
    %532 = vmatpush.msra.mxu0 %v507
    %533 = vmatpush.msra.mxu0 %v506
    %534 = vmatpush.msra.mxu0 %v505
    %535 = vmatmul.f32.gmra.mxu0 %v514
    %v536 = vpop.f32.mrf.mxu0
    %v537 = vadd.f32 %v511, %v536
    %538 = vmatmul.f32.gmra.mxu0 %v517
    %v539 = vpop.f32.mrf.mxu0
    %v540 = vadd.f32 %v511, %v539
    %541 = vdwg.mxu0
    %v542 = vadd.f32 %v110, %v537
    %v543 = vadd.f32 %v113, %v540
    %v544 = vld [vmem:[%s10] sm:$0x1]
    %v545 = vld [vmem:[%s11] sm:$0x1]
    %v546 = vsel %vm136, %v542, 0.0
    %547 = vadd.xlane.f32.xlu0 %v546
    %v548 = vpop.xlane.xlu0 %547
    %v549 = vsel %vm136, %v543, 0.0
    %550 = vadd.xlane.f32.xlu0 %v549
    %v551 = vpop.xlane.xlu0 %550
    %v552 = vmul.f32 %v548, %v149
    %v553 = vmul.f32 %v551, %v149
    %v554 = vsub.f32 %v542, %v552
    %v555 = vsub.f32 %v543, %v553
    %v556 = vmul.f32 %v554, %v554
    %v557 = vmul.f32 %v555, %v555
    %v558 = vsel %vm136, %v556, 0.0
    %559 = vadd.xlane.f32.xlu0 %v558
    %v560 = vpop.xlane.xlu0 %559
    %v561 = vsel %vm136, %v557, 0.0
    %562 = vadd.xlane.f32.xlu0 %v561
    %v563 = vpop.xlane.xlu0 %562
    %v564 = vmul.f32 %v560, %v149
    %v565 = vmul.f32 %v563, %v149
    %v566 = vadd.f32 %v564, 1e-05
    %v567 = vadd.f32 %v565, 1e-05
    %v568 = vrsqrt.pop %v566
    %v569 = vmul.f32 %v568, %v566
    %v570 = vmul.f32 %v569, %v568
    %v571 = vmul.f32 0.5, %v570
    %v572 = vsub.f32 1.5, %v571
    %v573 = vmul.f32 %v568, %v572
    %vm574 = vweird.f32 %v566
    %vm575 = vweird.f32 %v568
    %vm576 = vmor %vm574, %vm575
    %v577 = vsel %vm576, %v568, %v573
    %v578 = vrsqrt.pop %v567
    %v579 = vmul.f32 %v578, %v567
    %v580 = vmul.f32 %v579, %v578
    %v581 = vmul.f32 0.5, %v580
    %v582 = vsub.f32 1.5, %v581
    %v583 = vmul.f32 %v578, %v582
    %vm584 = vweird.f32 %v567
    %vm585 = vweird.f32 %v578
    %vm586 = vmor %vm584, %vm585
    %v587 = vsel %vm586, %v578, %v583
    %v588 = vmul.f32 %v554, %v577
    %v589 = vmul.f32 %v555, %v587
    %v591 = vperm.slane %v544, 0
    %v593 = vmul.f32 %v588, %v591
    %v594 = vmul.f32 %v589, %v591
    %v596 = vperm.slane %v545, 0
    %v598 = vadd.f32 %v593, %v596
    %v599 = vadd.f32 %v594, %v596
    %v600 = vld [vmem:[%s12] sm:$0xff]
    %v601 = vld [vmem:[%s12 + $0x8] sm:$0xff]
    %v602 = vld [vmem:[%s12 + $0x10] sm:$0xff]
    %v603 = vld [vmem:[%s12 + $0x18] sm:$0xff]
    %v604 = vld [vmem:[%s13] sm:$0x1]
    %v606 = vperm.slane %v604, 0
    %v609 = vsel %vm136, %v598, 0
    %v612 = vsel %vm136, %v599, 0
    %614 = vmatpush.msra.mxu0 0.0
    %615 = vmatpush.msra.mxu0 0.0
    %616 = vmatpush.msra.mxu0 0.0
    %617 = vmatpush.msra.mxu0 0.0
    %618 = vmatpush.msra.mxu0 0.0
    %619 = vmatpush.msra.mxu0 0.0
    %620 = vmatpush.msra.mxu0 0.0
    %621 = vmatpush.msra.mxu0 0.0
    %622 = vmatpush.msra.mxu0 0.0
    %623 = vmatpush.msra.mxu0 0.0
    %624 = vmatpush.msra.mxu0 0.0
    %625 = vmatpush.msra.mxu0 0.0
    %626 = vmatpush.msra.mxu0 %v603
    %627 = vmatpush.msra.mxu0 %v602
    %628 = vmatpush.msra.mxu0 %v601
    %629 = vmatpush.msra.mxu0 %v600
    %630 = vmatmul.f32.gmra.mxu0 %v609
    %v631 = vpop.f32.mrf.mxu0
    %v632 = vadd.f32 %v606, %v631
    %633 = vmatmul.f32.gmra.mxu0 %v612
    %v634 = vpop.f32.mrf.mxu0
    %v635 = vadd.f32 %v606, %v634
    %636 = vdwg.mxu0
    %v637 = vmul.f32 %v632, 0.5
    %v638 = vmul.f32 %v635, 0.5
    %v639 = vmul.f32 %v632, 0.044715
    %v640 = vmul.f32 %v635, 0.044715
    %v641 = vmul.f32 %v639, %v632
    %v642 = vmul.f32 %v640, %v635
    %v643 = vmul.f32 %v641, %v632
    %v644 = vmul.f32 %v642, %v635
    %v645 = vadd.f32 %v632, %v643
    %v646 = vadd.f32 %v635, %v644
    %v647 = vmul.f32 %v645, 0.7978846
    %v648 = vmul.f32 %v646, 0.7978846
    %v649 = vtanh.pop %v647
    %v650 = vtanh.pop %v648
    %v651 = vadd.f32 %v649, 1.0
    %v652 = vadd.f32 %v650, 1.0
    %v653 = vmul.f32 %v637, %v651
    %v654 = vmul.f32 %v638, %v652
    %v655 = vld [vmem:[%s14] sm:$0xff]
    %v656 = vld [vmem:[%s14 + $0x8] sm:$0xff]
    %v657 = vld [vmem:[%s14 + $0x10] sm:$0xff]
    %v658 = vld [vmem:[%s14 + $0x18] sm:$0xff]
    %v659 = vld [vmem:[%s14 + $0x20] sm:$0xff]
    %v660 = vld [vmem:[%s14 + $0x28] sm:$0xff]
    %v661 = vld [vmem:[%s14 + $0x30] sm:$0xff]
    %v662 = vld [vmem:[%s14 + $0x38] sm:$0xff]
    %v663 = vld [vmem:[%s14 + $0x40] sm:$0xff]
    %v664 = vld [vmem:[%s14 + $0x48] sm:$0xff]
    %v665 = vld [vmem:[%s14 + $0x50] sm:$0xff]
    %v666 = vld [vmem:[%s14 + $0x58] sm:$0xff]
    %v667 = vld [vmem:[%s14 + $0x60] sm:$0xff]
    %v668 = vld [vmem:[%s14 + $0x68] sm:$0xff]
    %v669 = vld [vmem:[%s14 + $0x70] sm:$0xff]
    %v670 = vld [vmem:[%s14 + $0x78] sm:$0xff]
    %v671 = vld [vmem:[%s15] sm:$0x1]
    %v673 = vperm.slane %v671, 0
    %675 = vmatpush.msra.mxu0 %v670
    %676 = vmatpush.msra.mxu0 %v669
    %677 = vmatpush.msra.mxu0 %v668
    %678 = vmatpush.msra.mxu0 %v667
    %679 = vmatpush.msra.mxu0 %v666
    %680 = vmatpush.msra.mxu0 %v665
    %681 = vmatpush.msra.mxu0 %v664
    %682 = vmatpush.msra.mxu0 %v663
    %683 = vmatpush.msra.mxu0 %v662
    %684 = vmatpush.msra.mxu0 %v661
    %685 = vmatpush.msra.mxu0 %v660
    %686 = vmatpush.msra.mxu0 %v659
    %687 = vmatpush.msra.mxu0 %v658
    %688 = vmatpush.msra.mxu0 %v657
    %689 = vmatpush.msra.mxu0 %v656
    %690 = vmatpush.msra.mxu0 %v655
    %691 = vmatmul.f32.gmra.mxu0 %v653
    %v692 = vpop.f32.mrf.mxu0
    %v693 = vadd.f32 %v673, %v692
    %694 = vmatmul.f32.gmra.mxu0 %v654
    %v695 = vpop.f32.mrf.mxu0
    %v696 = vadd.f32 %v673, %v695
    %697 = vdwg.mxu0
    %v698 = vadd.f32 %v542, %v693
    %v699 = vadd.f32 %v543, %v696
    %s700 = scalar_lea.vmem %s4, 1
    %v701 = vld [vmem:[%s700] sm:$0x1]
    %s702 = scalar_lea.vmem %s5, 1
    %v703 = vld [vmem:[%s702] sm:$0x1]
    %v704 = vsel %vm136, %v698, 0.0
    %705 = vadd.xlane.f32.xlu0 %v704
    %v706 = vpop.xlane.xlu0 %705
    %v707 = vsel %vm136, %v699, 0.0
    %708 = vadd.xlane.f32.xlu0 %v707
    %v709 = vpop.xlane.xlu0 %708
    %v710 = vmul.f32 %v706, %v149
    %v711 = vmul.f32 %v709, %v149
    %v712 = vsub.f32 %v698, %v710
    %v713 = vsub.f32 %v699, %v711
    %v714 = vmul.f32 %v712, %v712
    %v715 = vmul.f32 %v713, %v713
    %v716 = vsel %vm136, %v714, 0.0
    %717 = vadd.xlane.f32.xlu0 %v716
    %v718 = vpop.xlane.xlu0 %717
    %v719 = vsel %vm136, %v715, 0.0
    %720 = vadd.xlane.f32.xlu0 %v719
    %v721 = vpop.xlane.xlu0 %720
    %v722 = vmul.f32 %v718, %v149
    %v723 = vmul.f32 %v721, %v149
    %v724 = vadd.f32 %v722, 1e-05
    %v725 = vadd.f32 %v723, 1e-05
    %v726 = vrsqrt.pop %v724
    %v727 = vmul.f32 %v726, %v724
    %v728 = vmul.f32 %v727, %v726
    %v729 = vmul.f32 0.5, %v728
    %v730 = vsub.f32 1.5, %v729
    %v731 = vmul.f32 %v726, %v730
    %vm732 = vweird.f32 %v724
    %vm733 = vweird.f32 %v726
    %vm734 = vmor %vm732, %vm733
    %v735 = vsel %vm734, %v726, %v731
    %v736 = vrsqrt.pop %v725
    %v737 = vmul.f32 %v736, %v725
    %v738 = vmul.f32 %v737, %v736
    %v739 = vmul.f32 0.5, %v738
    %v740 = vsub.f32 1.5, %v739
    %v741 = vmul.f32 %v736, %v740
    %vm742 = vweird.f32 %v725
    %vm743 = vweird.f32 %v736
    %vm744 = vmor %vm742, %vm743
    %v745 = vsel %vm744, %v736, %v741
    %v746 = vmul.f32 %v712, %v735
    %v747 = vmul.f32 %v713, %v745
    %v749 = vperm.slane %v701, 0
    %v751 = vmul.f32 %v746, %v749
    %v752 = vmul.f32 %v747, %v749
    %v754 = vperm.slane %v703, 0
    %v756 = vadd.f32 %v751, %v754
    %v757 = vadd.f32 %v752, %v754
    %s758 = scalar_lea.vmem %s6, 32
    %v759 = vld [vmem:[%s758] sm:$0xff]
    %v760 = vld [vmem:[%s758 + $0x8] sm:$0xff]
    %v761 = vld [vmem:[%s758 + $0x10] sm:$0xff]
    %v762 = vld [vmem:[%s758 + $0x18] sm:$0xff]
    %s763 = scalar_lea.vmem %s7, 1
    %v764 = vld [vmem:[%s763] sm:$0x1]
    %v766 = vperm.slane %v764, 0
    %v769 = vsel %vm136, %v756, 0
    %v772 = vsel %vm136, %v757, 0
    %774 = vmatpush.msra.mxu0 0.0
    %775 = vmatpush.msra.mxu0 0.0
    %776 = vmatpush.msra.mxu0 0.0
    %777 = vmatpush.msra.mxu0 0.0
    %778 = vmatpush.msra.mxu0 0.0
    %779 = vmatpush.msra.mxu0 0.0
    %780 = vmatpush.msra.mxu0 0.0
    %781 = vmatpush.msra.mxu0 0.0
    %782 = vmatpush.msra.mxu0 0.0
    %783 = vmatpush.msra.mxu0 0.0
    %784 = vmatpush.msra.mxu0 0.0
    %785 = vmatpush.msra.mxu0 0.0
    %786 = vmatpush.msra.mxu0 %v762
    %787 = vmatpush.msra.mxu0 %v761
    %788 = vmatpush.msra.mxu0 %v760
    %789 = vmatpush.msra.mxu0 %v759
    %790 = vmatmul.f32.gmra.mxu0 %v769
    %v791 = vpop.f32.mrf.mxu0
    %v792 = vadd.f32 %v766, %v791
    %793 = vmatmul.f32.gmra.mxu0 %v772
    %v794 = vpop.f32.mrf.mxu0
    %v795 = vadd.f32 %v766, %v794
    %796 = vdwg.mxu0
    %798 = vrot.lane.b32.xlu0 %v792, 96
    %v799 = vpop.permute.xlu0 %798
    %v800 = vsel %vm238, %v792, 0
    %v802 = vsel %vm238, %v799, 0
    %804 = vmatpush.xpose.msra.mxu0 0.0
    %805 = vmatpush.xpose.msra.mxu0 0.0
    %806 = vmatpush.xpose.msra.mxu0 0.0
    %807 = vmatpush.xpose.msra.mxu0 0.0
    %808 = vmatpush.xpose.msra.mxu0 0.0
    %809 = vmatpush.xpose.msra.mxu0 0.0
    %810 = vmatpush.xpose.msra.mxu0 0.0
    %811 = vmatpush.xpose.msra.mxu0 0.0
    %812 = vmatpush.xpose.msra.mxu0 0.0
    %813 = vmatpush.xpose.msra.mxu0 0.0
    %814 = vmatpush.xpose.msra.mxu0 0.0
    %815 = vmatpush.xpose.msra.mxu0 0.0
    %816 = vmatpush.xpose.msra.mxu0 0.0
    %817 = vmatpush.xpose.msra.mxu0 0.0
    %818 = vmatpush.xpose.msra.mxu0 0.0
    %819 = vmatpush.xpose.msra.mxu0 %v802
    %820 = vmatmul.f32.gmra.mxu0 %v800
    %v821 = vpop.f32.mrf.mxu0
    %v822 = vadd.f32 %v132, %v821
    %823 = vdwg.mxu0
    %825 = vrot.lane.b32.xlu0 %v795, 96
    %v826 = vpop.permute.xlu0 %825
    %v827 = vsel %vm238, %v795, 0
    %v829 = vsel %vm238, %v826, 0
    %831 = vmatpush.xpose.msra.mxu0 0.0
    %832 = vmatpush.xpose.msra.mxu0 0.0
    %833 = vmatpush.xpose.msra.mxu0 0.0
    %834 = vmatpush.xpose.msra.mxu0 0.0
    %835 = vmatpush.xpose.msra.mxu0 0.0
    %836 = vmatpush.xpose.msra.mxu0 0.0
    %837 = vmatpush.xpose.msra.mxu0 0.0
    %838 = vmatpush.xpose.msra.mxu0 0.0
    %839 = vmatpush.xpose.msra.mxu0 0.0
    %840 = vmatpush.xpose.msra.mxu0 0.0
    %841 = vmatpush.xpose.msra.mxu0 0.0
    %842 = vmatpush.xpose.msra.mxu0 0.0
    %843 = vmatpush.xpose.msra.mxu0 0.0
    %844 = vmatpush.xpose.msra.mxu0 0.0
    %845 = vmatpush.xpose.msra.mxu0 0.0
    %846 = vmatpush.xpose.msra.mxu0 %v829
    %847 = vmatmul.f32.gmra.mxu0 %v827
    %v848 = vpop.f32.mrf.mxu0
    %v849 = vadd.f32 %v133, %v848
    %850 = vdwg.mxu0
    %v851 = vsel %vm290, %v822, -inf
    %852 = vmax.xlane.f32.xlu0 %v851
    %v853 = vpop.xlane.xlu0 %852
    %v854 = vsel %vm290, %v849, -inf
    %855 = vmax.xlane.f32.xlu0 %v854
    %v856 = vpop.xlane.xlu0 %855
    %v857 = vsub.f32 %v822, %v853
    %v858 = vsub.f32 %v849, %v856
    %v859 = vmul.f32 %v857, 1.442695
    %v860 = vpow.pop %v859
    %v861 = vmul.f32 %v858, 1.442695
    %v862 = vpow.pop %v861
    %v863 = vsel %vm290, %v860, 0.0
    %864 = vadd.xlane.f32.xlu0 %v863
    %v865 = vpop.xlane.xlu0 %864
    %v866 = vsel %vm290, %v862, 0.0
    %867 = vadd.xlane.f32.xlu0 %v866
    %v868 = vpop.xlane.xlu0 %867
    %v869 = vrcp.pop %v865
    %v870 = vrcp.pop %v868
    %v871 = vmul.f32 %v860, %v869
    %v872 = vmul.f32 %v862, %v870
    %873 = vrot.lane.b32.xlu0 %v792, 64
    %v874 = vpop.permute.xlu0 %873
    %v877 = vsel %vm290, %v871, 0
    %879 = vmatpush.msra.mxu0 0.0
    %880 = vmatpush.msra.mxu0 0.0
    %881 = vmatpush.msra.mxu0 0.0
    %882 = vmatpush.msra.mxu0 0.0
    %883 = vmatpush.msra.mxu0 0.0
    %884 = vmatpush.msra.mxu0 0.0
    %885 = vmatpush.msra.mxu0 0.0
    %886 = vmatpush.msra.mxu0 0.0
    %887 = vmatpush.msra.mxu0 0.0
    %888 = vmatpush.msra.mxu0 0.0
    %889 = vmatpush.msra.mxu0 0.0
    %890 = vmatpush.msra.mxu0 0.0
    %891 = vmatpush.msra.mxu0 0.0
    %892 = vmatpush.msra.mxu0 0.0
    %893 = vmatpush.msra.mxu0 0.0
    %894 = vmatpush.msra.mxu0 %v874
    %895 = vmatmul.f32.gmra.mxu0 %v877
    %v896 = vpop.f32.mrf.mxu0
    %v897 = vadd.f32 0.0, %v896
    %898 = vdwg.mxu0
    %899 = vrot.lane.b32.xlu0 %v795, 64
    %v900 = vpop.permute.xlu0 %899
    %v903 = vsel %vm290, %v872, 0
    %905 = vmatpush.msra.mxu0 0.0
    %906 = vmatpush.msra.mxu0 0.0
    %907 = vmatpush.msra.mxu0 0.0
    %908 = vmatpush.msra.mxu0 0.0
    %909 = vmatpush.msra.mxu0 0.0
    %910 = vmatpush.msra.mxu0 0.0
    %911 = vmatpush.msra.mxu0 0.0
    %912 = vmatpush.msra.mxu0 0.0
    %913 = vmatpush.msra.mxu0 0.0
    %914 = vmatpush.msra.mxu0 0.0
    %915 = vmatpush.msra.mxu0 0.0
    %916 = vmatpush.msra.mxu0 0.0
    %917 = vmatpush.msra.mxu0 0.0
    %918 = vmatpush.msra.mxu0 0.0
    %919 = vmatpush.msra.mxu0 0.0
    %920 = vmatpush.msra.mxu0 %v900
    %921 = vmatmul.f32.gmra.mxu0 %v903
    %v922 = vpop.f32.mrf.mxu0
    %v923 = vadd.f32 0.0, %v922
    %924 = vdwg.mxu0
    %925 = vrot.lane.b32.xlu0 %v792, 112
    %v926 = vpop.permute.xlu0 %925
    %927 = vrot.lane.b32.xlu0 %v792, 80
    %v928 = vpop.permute.xlu0 %927
    %v929 = vsel %vm238, %v926, 0
    %v931 = vsel %vm238, %v928, 0
    %933 = vmatpush.xpose.msra.mxu0 0.0
    %934 = vmatpush.xpose.msra.mxu0 0.0
    %935 = vmatpush.xpose.msra.mxu0 0.0
    %936 = vmatpush.xpose.msra.mxu0 0.0
    %937 = vmatpush.xpose.msra.mxu0 0.0
    %938 = vmatpush.xpose.msra.mxu0 0.0
    %939 = vmatpush.xpose.msra.mxu0 0.0
    %940 = vmatpush.xpose.msra.mxu0 0.0
    %941 = vmatpush.xpose.msra.mxu0 0.0
    %942 = vmatpush.xpose.msra.mxu0 0.0
    %943 = vmatpush.xpose.msra.mxu0 0.0
    %944 = vmatpush.xpose.msra.mxu0 0.0
    %945 = vmatpush.xpose.msra.mxu0 0.0
    %946 = vmatpush.xpose.msra.mxu0 0.0
    %947 = vmatpush.xpose.msra.mxu0 0.0
    %948 = vmatpush.xpose.msra.mxu0 %v931
    %949 = vmatmul.f32.gmra.mxu0 %v929
    %v950 = vpop.f32.mrf.mxu0
    %v951 = vadd.f32 %v132, %v950
    %952 = vdwg.mxu0
    %953 = vrot.lane.b32.xlu0 %v795, 112
    %v954 = vpop.permute.xlu0 %953
    %955 = vrot.lane.b32.xlu0 %v795, 80
    %v956 = vpop.permute.xlu0 %955
    %v957 = vsel %vm238, %v954, 0
    %v959 = vsel %vm238, %v956, 0
    %961 = vmatpush.xpose.msra.mxu0 0.0
    %962 = vmatpush.xpose.msra.mxu0 0.0
    %963 = vmatpush.xpose.msra.mxu0 0.0
    %964 = vmatpush.xpose.msra.mxu0 0.0
    %965 = vmatpush.xpose.msra.mxu0 0.0
    %966 = vmatpush.xpose.msra.mxu0 0.0
    %967 = vmatpush.xpose.msra.mxu0 0.0
    %968 = vmatpush.xpose.msra.mxu0 0.0
    %969 = vmatpush.xpose.msra.mxu0 0.0
    %970 = vmatpush.xpose.msra.mxu0 0.0
    %971 = vmatpush.xpose.msra.mxu0 0.0
    %972 = vmatpush.xpose.msra.mxu0 0.0
    %973 = vmatpush.xpose.msra.mxu0 0.0
    %974 = vmatpush.xpose.msra.mxu0 0.0
    %975 = vmatpush.xpose.msra.mxu0 0.0
    %976 = vmatpush.xpose.msra.mxu0 %v959
    %977 = vmatmul.f32.gmra.mxu0 %v957
    %v978 = vpop.f32.mrf.mxu0
    %v979 = vadd.f32 %v133, %v978
    %980 = vdwg.mxu0
    %v981 = vsel %vm290, %v951, -inf
    %982 = vmax.xlane.f32.xlu0 %v981
    %v983 = vpop.xlane.xlu0 %982
    %v984 = vsel %vm290, %v979, -inf
    %985 = vmax.xlane.f32.xlu0 %v984
    %v986 = vpop.xlane.xlu0 %985
    %v987 = vsub.f32 %v951, %v983
    %v988 = vsub.f32 %v979, %v986
    %v989 = vmul.f32 %v987, 1.442695
    %v990 = vpow.pop %v989
    %v991 = vmul.f32 %v988, 1.442695
    %v992 = vpow.pop %v991
    %v993 = vsel %vm290, %v990, 0.0
    %994 = vadd.xlane.f32.xlu0 %v993
    %v995 = vpop.xlane.xlu0 %994
    %v996 = vsel %vm290, %v992, 0.0
    %997 = vadd.xlane.f32.xlu0 %v996
    %v998 = vpop.xlane.xlu0 %997
    %v999 = vrcp.pop %v995
    %v1000 = vrcp.pop %v998
    %v1001 = vmul.f32 %v990, %v999
    %v1002 = vmul.f32 %v992, %v1000
    %1003 = vrot.lane.b32.xlu0 %v792, 48
    %v1004 = vpop.permute.xlu0 %1003
    %v1007 = vsel %vm290, %v1001, 0
    %1009 = vmatpush.msra.mxu0 0.0
    %1010 = vmatpush.msra.mxu0 0.0
    %1011 = vmatpush.msra.mxu0 0.0
    %1012 = vmatpush.msra.mxu0 0.0
    %1013 = vmatpush.msra.mxu0 0.0
    %1014 = vmatpush.msra.mxu0 0.0
    %1015 = vmatpush.msra.mxu0 0.0
    %1016 = vmatpush.msra.mxu0 0.0
    %1017 = vmatpush.msra.mxu0 0.0
    %1018 = vmatpush.msra.mxu0 0.0
    %1019 = vmatpush.msra.mxu0 0.0
    %1020 = vmatpush.msra.mxu0 0.0
    %1021 = vmatpush.msra.mxu0 0.0
    %1022 = vmatpush.msra.mxu0 0.0
    %1023 = vmatpush.msra.mxu0 0.0
    %1024 = vmatpush.msra.mxu0 %v1004
    %1025 = vmatmul.f32.gmra.mxu0 %v1007
    %v1026 = vpop.f32.mrf.mxu0
    %v1027 = vadd.f32 0.0, %v1026
    %1028 = vdwg.mxu0
    %1029 = vrot.lane.b32.xlu0 %v795, 48
    %v1030 = vpop.permute.xlu0 %1029
    %v1033 = vsel %vm290, %v1002, 0
    %1035 = vmatpush.msra.mxu0 0.0
    %1036 = vmatpush.msra.mxu0 0.0
    %1037 = vmatpush.msra.mxu0 0.0
    %1038 = vmatpush.msra.mxu0 0.0
    %1039 = vmatpush.msra.mxu0 0.0
    %1040 = vmatpush.msra.mxu0 0.0
    %1041 = vmatpush.msra.mxu0 0.0
    %1042 = vmatpush.msra.mxu0 0.0
    %1043 = vmatpush.msra.mxu0 0.0
    %1044 = vmatpush.msra.mxu0 0.0
    %1045 = vmatpush.msra.mxu0 0.0
    %1046 = vmatpush.msra.mxu0 0.0
    %1047 = vmatpush.msra.mxu0 0.0
    %1048 = vmatpush.msra.mxu0 0.0
    %1049 = vmatpush.msra.mxu0 0.0
    %1050 = vmatpush.msra.mxu0 %v1030
    %1051 = vmatmul.f32.gmra.mxu0 %v1033
    %v1052 = vpop.f32.mrf.mxu0
    %v1053 = vadd.f32 0.0, %v1052
    %1054 = vdwg.mxu0
    %1057 = vrot.lane.b32.xlu0 %v1027, 16
    %v1058 = vpop.permute.xlu0 %1057
    %1059 = vrot.lane.b32.xlu0 %v1053, 16
    %v1060 = vpop.permute.xlu0 %1059
    %v1063 = vsel %vm238, %v897, %v1058
    %v1064 = vsel %vm238, %v923, %v1060
    %s1065 = scalar_lea.vmem %s8, 32
    %v1066 = vld [vmem:[%s1065] sm:$0xff]
    %v1067 = vld [vmem:[%s1065 + $0x8] sm:$0xff]
    %v1068 = vld [vmem:[%s1065 + $0x10] sm:$0xff]
    %v1069 = vld [vmem:[%s1065 + $0x18] sm:$0xff]
    %s1070 = scalar_lea.vmem %s9, 1
    %v1071 = vld [vmem:[%s1070] sm:$0x1]
    %v1073 = vperm.slane %v1071, 0
    %v1076 = vsel %vm136, %v1063, 0
    %v1079 = vsel %vm136, %v1064, 0
    %1081 = vmatpush.msra.mxu0 0.0
    %1082 = vmatpush.msra.mxu0 0.0
    %1083 = vmatpush.msra.mxu0 0.0
    %1084 = vmatpush.msra.mxu0 0.0
    %1085 = vmatpush.msra.mxu0 0.0
    %1086 = vmatpush.msra.mxu0 0.0
    %1087 = vmatpush.msra.mxu0 0.0
    %1088 = vmatpush.msra.mxu0 0.0
    %1089 = vmatpush.msra.mxu0 0.0
    %1090 = vmatpush.msra.mxu0 0.0
    %1091 = vmatpush.msra.mxu0 0.0
    %1092 = vmatpush.msra.mxu0 0.0
    %1093 = vmatpush.msra.mxu0 %v1069
    %1094 = vmatpush.msra.mxu0 %v1068
    %1095 = vmatpush.msra.mxu0 %v1067
    %1096 = vmatpush.msra.mxu0 %v1066
    %1097 = vmatmul.f32.gmra.mxu0 %v1076
    %v1098 = vpop.f32.mrf.mxu0
    %v1099 = vadd.f32 %v1073, %v1098
    %1100 = vmatmul.f32.gmra.mxu0 %v1079
    %v1101 = vpop.f32.mrf.mxu0
    %v1102 = vadd.f32 %v1073, %v1101
    %1103 = vdwg.mxu0
    %v1104 = vadd.f32 %v698, %v1099
    %v1105 = vadd.f32 %v699, %v1102
    %s1106 = scalar_lea.vmem %s10, 1
    %v1107 = vld [vmem:[%s1106] sm:$0x1]
    %s1108 = scalar_lea.vmem %s11, 1
    %v1109 = vld [vmem:[%s1108] sm:$0x1]
    %v1110 = vsel %vm136, %v1104, 0.0
    %1111 = vadd.xlane.f32.xlu0 %v1110
    %v1112 = vpop.xlane.xlu0 %1111
    %v1113 = vsel %vm136, %v1105, 0.0
    %1114 = vadd.xlane.f32.xlu0 %v1113
    %v1115 = vpop.xlane.xlu0 %1114
    %v1116 = vmul.f32 %v1112, %v149
    %v1117 = vmul.f32 %v1115, %v149
    %v1118 = vsub.f32 %v1104, %v1116
    %v1119 = vsub.f32 %v1105, %v1117
    %v1120 = vmul.f32 %v1118, %v1118
    %v1121 = vmul.f32 %v1119, %v1119
    %v1122 = vsel %vm136, %v1120, 0.0
    %1123 = vadd.xlane.f32.xlu0 %v1122
    %v1124 = vpop.xlane.xlu0 %1123
    %v1125 = vsel %vm136, %v1121, 0.0
    %1126 = vadd.xlane.f32.xlu0 %v1125
    %v1127 = vpop.xlane.xlu0 %1126
    %v1128 = vmul.f32 %v1124, %v149
    %v1129 = vmul.f32 %v1127, %v149
    %v1130 = vadd.f32 %v1128, 1e-05
    %v1131 = vadd.f32 %v1129, 1e-05
    %v1132 = vrsqrt.pop %v1130
    %v1133 = vmul.f32 %v1132, %v1130
    %v1134 = vmul.f32 %v1133, %v1132
    %v1135 = vmul.f32 0.5, %v1134
    %v1136 = vsub.f32 1.5, %v1135
    %v1137 = vmul.f32 %v1132, %v1136
    %vm1138 = vweird.f32 %v1130
    %vm1139 = vweird.f32 %v1132
    %vm1140 = vmor %vm1138, %vm1139
    %v1141 = vsel %vm1140, %v1132, %v1137
    %v1142 = vrsqrt.pop %v1131
    %v1143 = vmul.f32 %v1142, %v1131
    %v1144 = vmul.f32 %v1143, %v1142
    %v1145 = vmul.f32 0.5, %v1144
    %v1146 = vsub.f32 1.5, %v1145
    %v1147 = vmul.f32 %v1142, %v1146
    %vm1148 = vweird.f32 %v1131
    %vm1149 = vweird.f32 %v1142
    %vm1150 = vmor %vm1148, %vm1149
    %v1151 = vsel %vm1150, %v1142, %v1147
    %v1152 = vmul.f32 %v1118, %v1141
    %v1153 = vmul.f32 %v1119, %v1151
    %v1155 = vperm.slane %v1107, 0
    %v1157 = vmul.f32 %v1152, %v1155
    %v1158 = vmul.f32 %v1153, %v1155
    %v1160 = vperm.slane %v1109, 0
    %v1162 = vadd.f32 %v1157, %v1160
    %v1163 = vadd.f32 %v1158, %v1160
    %s1164 = scalar_lea.vmem %s12, 32
    %v1165 = vld [vmem:[%s1164] sm:$0xff]
    %v1166 = vld [vmem:[%s1164 + $0x8] sm:$0xff]
    %v1167 = vld [vmem:[%s1164 + $0x10] sm:$0xff]
    %v1168 = vld [vmem:[%s1164 + $0x18] sm:$0xff]
    %s1169 = scalar_lea.vmem %s13, 1
    %v1170 = vld [vmem:[%s1169] sm:$0x1]
    %v1172 = vperm.slane %v1170, 0
    %v1175 = vsel %vm136, %v1162, 0
    %v1178 = vsel %vm136, %v1163, 0
    %1180 = vmatpush.msra.mxu0 0.0
    %1181 = vmatpush.msra.mxu0 0.0
    %1182 = vmatpush.msra.mxu0 0.0
    %1183 = vmatpush.msra.mxu0 0.0
    %1184 = vmatpush.msra.mxu0 0.0
    %1185 = vmatpush.msra.mxu0 0.0
    %1186 = vmatpush.msra.mxu0 0.0
    %1187 = vmatpush.msra.mxu0 0.0
    %1188 = vmatpush.msra.mxu0 0.0
    %1189 = vmatpush.msra.mxu0 0.0
    %1190 = vmatpush.msra.mxu0 0.0
    %1191 = vmatpush.msra.mxu0 0.0
    %1192 = vmatpush.msra.mxu0 %v1168
    %1193 = vmatpush.msra.mxu0 %v1167
    %1194 = vmatpush.msra.mxu0 %v1166
    %1195 = vmatpush.msra.mxu0 %v1165
    %1196 = vmatmul.f32.gmra.mxu0 %v1175
    %v1197 = vpop.f32.mrf.mxu0
    %v1198 = vadd.f32 %v1172, %v1197
    %1199 = vmatmul.f32.gmra.mxu0 %v1178
    %v1200 = vpop.f32.mrf.mxu0
    %v1201 = vadd.f32 %v1172, %v1200
    %1202 = vdwg.mxu0
    %v1203 = vmul.f32 %v1198, 0.5
    %v1204 = vmul.f32 %v1201, 0.5
    %v1205 = vmul.f32 %v1198, 0.044715
    %v1206 = vmul.f32 %v1201, 0.044715
    %v1207 = vmul.f32 %v1205, %v1198
    %v1208 = vmul.f32 %v1206, %v1201
    %v1209 = vmul.f32 %v1207, %v1198
    %v1210 = vmul.f32 %v1208, %v1201
    %v1211 = vadd.f32 %v1198, %v1209
    %v1212 = vadd.f32 %v1201, %v1210
    %v1213 = vmul.f32 %v1211, 0.7978846
    %v1214 = vmul.f32 %v1212, 0.7978846
    %v1215 = vtanh.pop %v1213
    %v1216 = vtanh.pop %v1214
    %v1217 = vadd.f32 %v1215, 1.0
    %v1218 = vadd.f32 %v1216, 1.0
    %v1219 = vmul.f32 %v1203, %v1217
    %v1220 = vmul.f32 %v1204, %v1218
    %s1221 = scalar_lea.vmem %s14, 128
    %v1222 = vld [vmem:[%s1221] sm:$0xff]
    %v1223 = vld [vmem:[%s1221 + $0x8] sm:$0xff]
    %v1224 = vld [vmem:[%s1221 + $0x10] sm:$0xff]
    %v1225 = vld [vmem:[%s1221 + $0x18] sm:$0xff]
    %v1226 = vld [vmem:[%s1221 + $0x20] sm:$0xff]
    %v1227 = vld [vmem:[%s1221 + $0x28] sm:$0xff]
    %v1228 = vld [vmem:[%s1221 + $0x30] sm:$0xff]
    %v1229 = vld [vmem:[%s1221 + $0x38] sm:$0xff]
    %v1230 = vld [vmem:[%s1221 + $0x40] sm:$0xff]
    %v1231 = vld [vmem:[%s1221 + $0x48] sm:$0xff]
    %v1232 = vld [vmem:[%s1221 + $0x50] sm:$0xff]
    %v1233 = vld [vmem:[%s1221 + $0x58] sm:$0xff]
    %v1234 = vld [vmem:[%s1221 + $0x60] sm:$0xff]
    %v1235 = vld [vmem:[%s1221 + $0x68] sm:$0xff]
    %v1236 = vld [vmem:[%s1221 + $0x70] sm:$0xff]
    %v1237 = vld [vmem:[%s1221 + $0x78] sm:$0xff]
    %s1238 = scalar_lea.vmem %s15, 1
    %v1239 = vld [vmem:[%s1238] sm:$0x1]
    %v1241 = vperm.slane %v1239, 0
    %1243 = vmatpush.msra.mxu0 %v1237
    %1244 = vmatpush.msra.mxu0 %v1236
    %1245 = vmatpush.msra.mxu0 %v1235
    %1246 = vmatpush.msra.mxu0 %v1234
    %1247 = vmatpush.msra.mxu0 %v1233
    %1248 = vmatpush.msra.mxu0 %v1232
    %1249 = vmatpush.msra.mxu0 %v1231
    %1250 = vmatpush.msra.mxu0 %v1230
    %1251 = vmatpush.msra.mxu0 %v1229
    %1252 = vmatpush.msra.mxu0 %v1228
    %1253 = vmatpush.msra.mxu0 %v1227
    %1254 = vmatpush.msra.mxu0 %v1226
    %1255 = vmatpush.msra.mxu0 %v1225
    %1256 = vmatpush.msra.mxu0 %v1224
    %1257 = vmatpush.msra.mxu0 %v1223
    %1258 = vmatpush.msra.mxu0 %v1222
    %1259 = vmatmul.f32.gmra.mxu0 %v1219
    %v1260 = vpop.f32.mrf.mxu0
    %v1261 = vadd.f32 %v1241, %v1260
    %1262 = vmatmul.f32.gmra.mxu0 %v1220
    %v1263 = vpop.f32.mrf.mxu0
    %v1264 = vadd.f32 %v1241, %v1263
    %1265 = vdwg.mxu0
    %v1266 = vadd.f32 %v1104, %v1261
    %v1267 = vadd.f32 %v1105, %v1264
    %v1268 = vld [vmem:[%s16] sm:$0x1]
    %v1269 = vld [vmem:[%s17] sm:$0x1]
    %v1272 = vrot.slane %v1267, 7
    %vm1275 = vcmask 261127
    %v1276 = vsel %vm1275, %v1266, 0.0
    %1277 = vadd.xlane.f32.xlu0 %v1276
    %v1278 = vpop.xlane.xlu0 %1277
    %vm1279 = vcmask 253952
    %v1280 = vsel %vm1279, %v1272, 0.0
    %1281 = vadd.xlane.f32.xlu0 %v1280
    %v1282 = vpop.xlane.xlu0 %1281
    %v1283 = vmul.f32 %v1278, %v149
    %v1284 = vmul.f32 %v1282, %v149
    %v1287 = vrot.slane %v1284, 1
    %v1290 = vsub.f32 %v1266, %v1283
    %v1291 = vsub.f32 %v1267, %v1287
    %v1292 = vmul.f32 %v1290, %v1290
    %v1293 = vmul.f32 %v1291, %v1291
    %v1296 = vrot.slane %v1293, 7
    %v1299 = vsel %vm1275, %v1292, 0.0
    %1300 = vadd.xlane.f32.xlu0 %v1299
    %v1301 = vpop.xlane.xlu0 %1300
    %v1302 = vsel %vm1279, %v1296, 0.0
    %1303 = vadd.xlane.f32.xlu0 %v1302
    %v1304 = vpop.xlane.xlu0 %1303
    %v1305 = vmul.f32 %v1301, %v149
    %v1306 = vmul.f32 %v1304, %v149
    %v1307 = vadd.f32 %v1305, 1e-05
    %v1308 = vadd.f32 %v1306, 1e-05
    %v1309 = vrsqrt.pop %v1307
    %v1310 = vmul.f32 %v1309, %v1307
    %v1311 = vmul.f32 %v1310, %v1309
    %v1312 = vmul.f32 0.5, %v1311
    %v1313 = vsub.f32 1.5, %v1312
    %v1314 = vmul.f32 %v1309, %v1313
    %vm1315 = vweird.f32 %v1307
    %vm1316 = vweird.f32 %v1309
    %vm1317 = vmor %vm1315, %vm1316
    %v1318 = vsel %vm1317, %v1309, %v1314
    %v1319 = vrsqrt.pop %v1308
    %v1320 = vmul.f32 %v1319, %v1308
    %v1321 = vmul.f32 %v1320, %v1319
    %v1322 = vmul.f32 0.5, %v1321
    %v1323 = vsub.f32 1.5, %v1322
    %v1324 = vmul.f32 %v1319, %v1323
    %vm1325 = vweird.f32 %v1308
    %vm1326 = vweird.f32 %v1319
    %vm1327 = vmor %vm1325, %vm1326
    %v1328 = vsel %vm1327, %v1319, %v1324
    %v1331 = vrot.slane %v1328, 1
    %v1334 = vmul.f32 %v1290, %v1318
    %v1335 = vmul.f32 %v1291, %v1331
    %v1337 = vperm.slane %v1268, 0
    %v1339 = vmul.f32 %v1334, %v1337
    %v1340 = vmul.f32 %v1335, %v1337
    %v1342 = vperm.slane %v1269, 0
    %v1344 = vadd.f32 %v1339, %v1342
    %v1345 = vadd.f32 %v1340, %v1342
    %v1348 = vrot.slane %v1345, 7
    %1351 = vst.msk [vmem:[#allocation2 - $0x7] sm:$0x80] %vm1275, %v1344
    %1352 = vst.msk [vmem:[#allocation2 + $0x1] sm:$0x1] %vm1279, %v1348
    // Predicated region
    $region74: #{tpu_custom_call.1} parent=1 // pred_check
      _
    $region75: #{tpu_custom_call.1} parent=1 // pred_check_branch
      %1354 = sbr.rel (0) target = $region77
    $region76: #{tpu_custom_call.1} parent=1 // pred_region
      %1356 = vsyncadd [#allocation3], 0
      %s1358 = sshll.u32 [#allocation2], 4
      %s1359 = int_to_ptr.vmem [resolvable:$true] %s1358
      %s1360 = sshll.u32 %s18, 4
      %s1361 = int_to_ptr.hbm [resolvable:$true] %s1360
      %1363 = dma.vmem_to_hbm [thread:$0]  %s1359, 32, %s1361, [#allocation3]
    $region77: #{tpu_custom_call.1} parent=1 // pred_fallthru
      _
    // Predicated region
    $region78: #{tpu_custom_call.1} parent=1 // pred_check
      _
    $region79: #{tpu_custom_call.1} parent=1 // pred_check_branch
      %1365 = sbr.rel (0) target = $region81
    $region80: #{tpu_custom_call.1} parent=1 // pred_region
      %1367 = dma.done [#allocation3], 32
    $region81: #{tpu_custom_call.1} parent=1 // pred_fallthru
      _
    %1368 = vsyncpa [#allocation3], 1

</llo_original>
